<compile_context>
chip_gen: v6e
topology: v6e:2x2x1
jax: 0.10.0
libtpu: 0.0.40
codegen_flags: <defaults>
</compile_context>

<pallas_src>
import functools

import jax
import jax.numpy as jnp
from jax import lax
from jax.experimental import pallas as pl
from jax.experimental.pallas import tpu as pltpu

D = 128          # embedding dim (fixed by the PyTorch module: Linear(128, ...))
H1 = 64          # MLP hidden width
NEG = -1.0e30    # finite "-inf" sentinel for max-pool


# --------------------------------------------------------------------------
# Fused kernel: per-node feature fusion + global_max_pool accumulation
# --------------------------------------------------------------------------
def _fused_kernel(off_ref, gmin_ref, gmax_ref,            # scalar prefetch (SMEM)
                  b_ref, t_ref, taps_ref,
                  w128lo_ref, w128hi_ref, b128_ref,
                  wconlo_ref, wconhi_ref, bcon_ref,
                  wB_ref, bB_ref, wT_ref, bT_ref,
                  out_ref, sne_ref,
                  *, tn):
    c = pl.program_id(0)                      # core-split axis ("parallel")
    i = pl.program_id(1)                      # node-tile axis ("arbitrary")
    tiles_per_core = pl.num_programs(1)
    tile_idx = c * tiles_per_core + i
    row_start = tile_idx * tn

    Bf = b_ref[...]                           # (tn, 128) f32
    Tf = t_ref[...]                           # (tn, 128) f32
    Bb = Bf.astype(jnp.bfloat16)              # bf16 MXU operands, f32 accumulate
    Tb = Tf.astype(jnp.bfloat16)

    # ---- fc_128 on cat([B, T], dim=1): split-K matmul (no lane concat) -----
    con = (jnp.dot(Bb, w128lo_ref[...], preferred_element_type=jnp.float32)
           + jnp.dot(Tb, w128hi_ref[...], preferred_element_type=jnp.float32)
           + b128_ref[...])                                     # (tn, 128) f32

    # ---- atten: Conv1d(k=3, pad=1, no bias) over cat([con, con], 1) --------
    # base = k0*left + k1*con + k2*right; the two 128-wide halves of the
    # 256-wide sequence only differ at the zero-padded edge lanes (0 / 127),
    # so correct them with single masked rows instead of full coef rows.
    tr = taps_ref[...]                        # (8, 128): k0,k1,k2, k0*e0, k2*e127
    left = pltpu.roll(con, shift=1, axis=1)          # con[(j-1) mod 128]
    right = pltpu.roll(con, shift=D - 1, axis=1)     # con[(j+1) mod 128]
    base = left * tr[0:1] + con * tr[1:2] + right * tr[2:3]
    att_lo = jax.nn.sigmoid(base - left * tr[3:4])   # lane 0: no left tap
    att_hi = jax.nn.sigmoid(base - right * tr[4:5])  # lane 127: no right tap

    # ---- fc_Con on the 256-wide attention (split-K again) ------------------
    con2 = (jnp.dot(att_lo.astype(jnp.bfloat16), wconlo_ref[...],
                    preferred_element_type=jnp.float32)
            + jnp.dot(att_hi.astype(jnp.bfloat16), wconhi_ref[...],
                      preferred_element_type=jnp.float32)
            + bcon_ref[...])

    pred_B = jnp.maximum(
        jnp.dot(Bb, wB_ref[...], preferred_element_type=jnp.float32)
        + bB_ref[...], 0.0)
    pred_T = jnp.maximum(
        jnp.dot(Tb, wT_ref[...], preferred_element_type=jnp.float32)
        + bT_ref[...], 0.0)

    out = con2 * pred_B + Bf + (1.0 - con2) * pred_T + Tf       # heat_TGSS tile
    out_ref[...] = out

    # ---- fused global_max_pool: only graphs present in this tile -----------
    @pl.when(i == 0)
    def _init():
        sne_ref[...] = jnp.full(sne_ref.shape, NEG, dtype=jnp.float32)

    g_lo = gmin_ref[tile_idx]                 # first graph id in this row tile
    g_hi = gmax_ref[tile_idx]                 # last graph id in this row tile
    row_idx = lax.broadcasted_iota(jnp.int32, (tn, 1), 0) + row_start

    def pool_one(g, carry):
        lo = off_ref[g]                       # graph g spans rows [lo, hi)
        hi = off_ref[g + 1]
        mask = (row_idx >= lo) & (row_idx < hi)
        part = jnp.max(jnp.where(mask, out, NEG), axis=0, keepdims=True)
        sne_ref[pl.ds(g, 1), :] = jnp.maximum(sne_ref[pl.ds(g, 1), :], part)
        return carry

    lax.fori_loop(g_lo, g_hi + 1, pool_one, 0)


def fused_forward(bilstm, transformer, batch, params, num_graphs,
                  tile_rows=1024, num_core_splits=2):
    """Fused fusion + pool kernel, MLP head in plain JAX.

    Returns (pred, sne, heat_TGSS).  Assumes `batch` is sorted (contiguous
    rows per graph), the standard PyG layout.
    """
    N = bilstm.shape[0]
    G = int(num_graphs)
    G_pad = max(8, ((G + 7) // 8) * 8)
    NC = max(1, int(num_core_splits))

    tn = min(tile_rows, ((N + 7) // 8) * 8)
    tn = max(8, ((tn + 7) // 8) * 8)
    n_tiles = -(-N // tn)
    tiles_per_core = -(-n_tiles // NC)
    n_tiles_total = NC * tiles_per_core
    Np = n_tiles_total * tn
    pad = Np - N
    if pad:
        bilstm = jnp.pad(bilstm, ((0, pad), (0, 0)))
        transformer = jnp.pad(transformer, ((0, pad), (0, 0)))

    # ---- scalar-prefetch tables (SMEM): graph offsets + per-tile g range ----
    batch_flat = batch.reshape(-1).astype(jnp.int32)            # (N,), sorted
    off = jnp.searchsorted(batch_flat,
                           jnp.arange(G_pad + 1, dtype=jnp.int32),
                           side="left").astype(jnp.int32)        # (G_pad+1,)
    tile_starts = jnp.arange(n_tiles_total, dtype=jnp.int32) * tn
    gmin = batch_flat[jnp.minimum(tile_starts, N - 1)]
    gmax = batch_flat[jnp.minimum(tile_starts + (tn - 1), N - 1)]

    bf16 = jnp.bfloat16
    w128_lo = params["w128"][:D].astype(bf16)
    w128_hi = params["w128"][D:].astype(bf16)
    wcon_lo = params["wcon"][:D].astype(bf16)
    wcon_hi = params["wcon"][D:].astype(bf16)
    wB = params["wB"].astype(bf16)
    wT = params["wT"].astype(bf16)

    # Conv tap rows: k0, k1, k2 (full lanes) + lane-0 / lane-127 corrections.
    k = params["kconv"].astype(jnp.float32)
    ones = jnp.ones((1, D), jnp.float32)
    e0 = jnp.zeros((1, D), jnp.float32).at[0, 0].set(1.0)
    e_last = jnp.zeros((1, D), jnp.float32).at[0, D - 1].set(1.0)
    taps = jnp.concatenate([k[0] * ones, k[1] * ones, k[2] * ones,
                            k[0] * e0, k[2] * e_last,
                            jnp.zeros((3, D), jnp.float32)], axis=0)   # (8, 128)

    row = pl.BlockSpec((tn, D), lambda c, i, *_: (c * tiles_per_core + i, 0))

    def const(shape):
        return pl.BlockSpec(shape, lambda c, i, *_: (0, 0))

    heat_p, sne_part = pl.pallas_call(
        functools.partial(_fused_kernel, tn=tn),
        out_shape=(jax.ShapeDtypeStruct((Np, D), jnp.float32),        # heat_TGSS
                   jax.ShapeDtypeStruct((NC * G_pad, D), jnp.float32)),  # pool slabs
        grid_spec=pltpu.PrefetchScalarGridSpec(
            num_scalar_prefetch=3,                  # off, gmin, gmax -> SMEM
            grid=(NC, tiles_per_core),
            in_specs=[
                row, row,                                       # BiLSTM / Transformer
                const((8, D)),                                  # conv tap rows
                const((D, D)), const((D, D)), const((1, D)),    # fc_128 (split) + bias
                const((D, D)), const((D, D)), const((1, D)),    # fc_Con (split) + bias
                const((D, D)), const((1, D)),                   # fc_B
                const((D, D)), const((1, D)),                   # fc_T
            ],
            out_specs=(
                pl.BlockSpec((tn, D), lambda c, i, *_: (c * tiles_per_core + i, 0)),
                pl.BlockSpec((G_pad, D), lambda c, i, *_: (c, 0)),   # per-core slab
            ),
        ),
        compiler_params=pltpu.CompilerParams(
            dimension_semantics=("parallel", "arbitrary"),
            vmem_limit_bytes=32 * 1024 * 1024),
    )(off, gmin, gmax,
      bilstm, transformer, taps,
      w128_lo, w128_hi, params["b128"],
      wcon_lo, wcon_hi, params["bcon"],
      wB, params["bB"], wT, params["bT"])

    # Combine per-core partial pools; slice off graph padding.
    sne = jnp.max(sne_part.reshape(NC, G_pad, D), axis=0)[:G]

    # MLP head on pooled graph features: tiny (G x 128 x 64), run in plain JAX.
    hp = lax.Precision.HIGHEST
    h = jnp.maximum(jnp.dot(sne, params["w1"], precision=hp) + params["b1"], 0.0)
    h = jnp.maximum(jnp.dot(h, params["w2"], precision=hp) + params["b2"], 0.0)
    pred = jnp.dot(h, params["w3"], precision=hp) + params["b3"]

    return pred, sne, heat_p[:N]


# --------------------------------------------------------------------------
# Full forward (glue in plain JAX)
# --------------------------------------------------------------------------
def gnn_predicted_forward(bilstm_feature, transformer_feature, gnn_feature,
                          batch, params, num_graphs, tile_rows=1024,
                          num_core_splits=2):
    heat_B = bilstm_feature
    heat_T = transformer_feature
    heat_G = gnn_feature
    pred, sne, heat_TGSS = fused_forward(bilstm_feature, transformer_feature,
                                         batch, params, num_graphs,
                                         tile_rows, num_core_splits)
    return pred, sne, heat_B, heat_T, heat_G, heat_TGSS


# --------------------------------------------------------------------------
# Pure-JAX reference (same bf16-operand matmuls) for a loose sanity check
# --------------------------------------------------------------------------
def _reference_forward(bilstm, transformer, batch, params, num_graphs):
    bf16 = jnp.bfloat16

    def bdot(a, w):
        return jnp.dot(a.astype(bf16), w.astype(bf16),
                       preferred_element_type=jnp.float32)

    cat = jnp.concatenate([bilstm, transformer], axis=1)
    con = bdot(cat, params["w128"]) + params["b128"]
    xt = jnp.concatenate([con, con], axis=1)                 # (N, 256)
    xp = jnp.pad(xt, ((0, 0), (1, 1)))
    k = params["kconv"]
    att = jax.nn.sigmoid(k[0] * xp[:, :-2] + k[1] * xp[:, 1:-1] + k[2] * xp[:, 2:])
    con2 = bdot(att, params["wcon"]) + params["bcon"]
    pb = jnp.maximum(bdot(bilstm, params["wB"]) + params["bB"], 0.0)
    pt = jnp.maximum(bdot(transformer, params["wT"]) + params["bT"], 0.0)
    out = con2 * pb + bilstm + (1.0 - con2) * pt + transformer
    pooled = jax.ops.segment_max(out, batch[:, 0], num_segments=num_graphs)
    hp = lax.Precision.HIGHEST
    h = jnp.maximum(jnp.dot(pooled, params["w1"], precision=hp) + params["b1"], 0.0)
    h = jnp.maximum(jnp.dot(h, params["w2"], precision=hp) + params["b2"], 0.0)
    pred = jnp.dot(h, params["w3"], precision=hp) + params["b3"]
    return pred, pooled, out


# --------------------------------------------------------------------------
# Deterministic parameter init (PyTorch layer shapes; weights stored
# transposed as (fan_in, fan_out) for x @ W).
# --------------------------------------------------------------------------
def _linear(key, fan_in, fan_out):
    kw, kb = jax.random.split(key)
    bound = 1.0 / (fan_in ** 0.5)
    w = jax.random.uniform(kw, (fan_in, fan_out), jnp.float32, -bound, bound)
    b = jax.random.uniform(kb, (1, fan_out), jnp.float32, -bound, bound)
    return w, b


def init_params(key):
    keys = jax.random.split(key, 9)
    p = {}
    p["w128"], p["b128"] = _linear(keys[0], 2 * D, D)    # fc_128: Linear(256, 128)
    p["wcon"], p["bcon"] = _linear(keys[1], 2 * D, D)    # fc_Con: Linear(256, 128)
    p["wB"], p["bB"] = _linear(keys[2], D, D)            # fc_B:   Linear(128, 128)
    p["wT"], p["bT"] = _linear(keys[3], D, D)            # fc_T:   Linear(128, 128)
    # merge_atten_seq: Conv1d(1, 1, kernel_size=3, padding=1, bias=False)
    bound = 1.0 / (3.0 ** 0.5)
    p["kconv"] = jax.random.uniform(keys[4], (3,), jnp.float32, -bound, bound)
    # MLP: Linear(128,64) -> ReLU -> Linear(64,64) -> ReLU -> Linear(64,1)
    p["w1"], p["b1"] = _linear(keys[5], D, H1)
    p["w2"], p["b2"] = _linear(keys[6], H1, H1)
    p["w3"], p["b3"] = _linear(keys[7], H1, 1)
    return p


if __name__ == "__main__":
    key = jax.random.PRNGKey(0)
    k_params, k_b, k_t, k_g = jax.random.split(key, 4)

    N, G = 20, 2                      # small demo: 20 atoms over 2 graphs
    params = init_params(k_params)

    bilstm_feature = jax.random.normal(k_b, (N, D), jnp.float32)
    transformer_feature = jax.random.normal(k_t, (N, D), jnp.float32)
    gnn_feature = jax.random.normal(k_g, (N, D), jnp.float32)
    # Sorted / contiguous-per-graph batch vector (standard PyG layout).
    batch = jnp.concatenate([jnp.zeros((9,), jnp.int32),
                             jnp.ones((11,), jnp.int32)]).reshape(N, 1)

    # tile_rows=8 + num_core_splits=2 exercises multi-tile accumulation, the
    # per-core pool slabs and tail padding at this tiny N; production default
    # is 1024 rows/tile with weights resident in VMEM.
    outs = gnn_predicted_forward(bilstm_feature, transformer_feature,
                                 gnn_feature, batch, params,
                                 num_graphs=G, tile_rows=8, num_core_splits=2)
    outs = jax.block_until_ready(outs)
    pred, sne, heat_B, heat_T, heat_G, heat_TGSS = outs

    assert pred.shape == (G, 1)
    assert sne.shape == (G, D)
    assert heat_TGSS.shape == (N, D)

    r_pred, r_sne, r_out = _reference_forward(bilstm_feature, transformer_feature,
                                              batch, params, G)
    assert float(jnp.max(jnp.abs(heat_TGSS - r_out))) < 5e-2
    assert float(jnp.max(jnp.abs(sne - r_sne))) < 5e-2
    assert float(jnp.max(jnp.abs(pred - r_pred))) < 5e-2

    print("KERNEL_OK")
</pallas_src>

<mosaic_0001>
module attributes {stable_mosaic.version = 11 : i64} {
  func.func @_fused_kernel(%arg0: i32, %arg1: i32, %arg2: memref<9xi32, #tpu.memory_space<smem>>, %arg3: memref<4xi32, #tpu.memory_space<smem>>, %arg4: memref<4xi32, #tpu.memory_space<smem>>, %arg5: memref<8x128xf32, #tpu.memory_space<vmem>>, %arg6: memref<8x128xf32, #tpu.memory_space<vmem>>, %arg7: memref<8x128xf32, #tpu.memory_space<vmem>>, %arg8: memref<128x128xbf16, #tpu.memory_space<vmem>>, %arg9: memref<128x128xbf16, #tpu.memory_space<vmem>>, %arg10: memref<1x128xf32, #tpu.memory_space<vmem>>, %arg11: memref<128x128xbf16, #tpu.memory_space<vmem>>, %arg12: memref<128x128xbf16, #tpu.memory_space<vmem>>, %arg13: memref<1x128xf32, #tpu.memory_space<vmem>>, %arg14: memref<128x128xbf16, #tpu.memory_space<vmem>>, %arg15: memref<1x128xf32, #tpu.memory_space<vmem>>, %arg16: memref<128x128xbf16, #tpu.memory_space<vmem>>, %arg17: memref<1x128xf32, #tpu.memory_space<vmem>>, %arg18: memref<8x128xf32, #tpu.memory_space<vmem>>, %arg19: memref<8x128xf32, #tpu.memory_space<vmem>>) attributes {dimension_semantics = [#tpu.dimension_semantics<parallel>, #tpu.dimension_semantics<arbitrary>], iteration_bounds = array<i64: 2, 2>, scalar_prefetch = 3 : i64, scratch_operands = 0 : i64, tpu.core_type = #tpu.core_type<tc>, window_params = [{transform_indices = @transform_0, window_bounds = array<i64: 8, 128>}, {transform_indices = @transform_1, window_bounds = array<i64: 8, 128>}, {pipeline_mode = #tpu.pipeline_mode<synchronous>, transform_indices = @transform_2, window_bounds = array<i64: 8, 128>}, {pipeline_mode = #tpu.pipeline_mode<synchronous>, transform_indices = @transform_3, window_bounds = array<i64: 128, 128>}, {pipeline_mode = #tpu.pipeline_mode<synchronous>, transform_indices = @transform_4, window_bounds = array<i64: 128, 128>}, {pipeline_mode = #tpu.pipeline_mode<synchronous>, transform_indices = @transform_5, window_bounds = array<i64: 1, 128>}, {pipeline_mode = #tpu.pipeline_mode<synchronous>, transform_indices = @transform_6, window_bounds = array<i64: 128, 128>}, {pipeline_mode = #tpu.pipeline_mode<synchronous>, transform_indices = @transform_7, window_bounds = array<i64: 128, 128>}, {pipeline_mode = #tpu.pipeline_mode<synchronous>, transform_indices = @transform_8, window_bounds = array<i64: 1, 128>}, {pipeline_mode = #tpu.pipeline_mode<synchronous>, transform_indices = @transform_9, window_bounds = array<i64: 128, 128>}, {pipeline_mode = #tpu.pipeline_mode<synchronous>, transform_indices = @transform_10, window_bounds = array<i64: 1, 128>}, {pipeline_mode = #tpu.pipeline_mode<synchronous>, transform_indices = @transform_11, window_bounds = array<i64: 128, 128>}, {pipeline_mode = #tpu.pipeline_mode<synchronous>, transform_indices = @transform_12, window_bounds = array<i64: 1, 128>}, {transform_indices = @transform_13, window_bounds = array<i64: 8, 128>}, {transform_indices = @transform_14, window_bounds = array<i64: 8, 128>}]} {
    %c2_i32 = arith.constant 2 : i32
    %0 = arith.muli %arg0, %c2_i32 : i32
    %1 = arith.addi %0, %arg1 : i32
    %c8_i32 = arith.constant 8 : i32
    %2 = arith.muli %1, %c8_i32 : i32
    %c0 = arith.constant 0 : index
    %c0_0 = arith.constant 0 : index
    %3 = vector.load %arg5[%c0, %c0_0] : memref<8x128xf32, #tpu.memory_space<vmem>>, vector<8x128xf32>
    %c0_1 = arith.constant 0 : index
    %c0_2 = arith.constant 0 : index
    %4 = vector.load %arg6[%c0_1, %c0_2] : memref<8x128xf32, #tpu.memory_space<vmem>>, vector<8x128xf32>
    %5 = arith.truncf %3 : vector<8x128xf32> to vector<8x128xbf16>
    %6 = arith.truncf %4 : vector<8x128xf32> to vector<8x128xbf16>
    %c0_3 = arith.constant 0 : index
    %c0_4 = arith.constant 0 : index
    %7 = vector.load %arg8[%c0_3, %c0_4] : memref<128x128xbf16, #tpu.memory_space<vmem>>, vector<128x128xbf16>
    %cst = arith.constant dense<0.000000e+00> : vector<8x128xf32>
    %8 = tpu.matmul %5, %7, %cst {dimension_numbers = #tpu.dot_dimension_numbers<[1], [0], [0], [1], [0, 0, 1, 1], [], []>} : vector<8x128xbf16>, vector<128x128xbf16>, vector<8x128xf32> -> vector<8x128xf32>
    %c0_5 = arith.constant 0 : index
    %c0_6 = arith.constant 0 : index
    %9 = vector.load %arg9[%c0_5, %c0_6] : memref<128x128xbf16, #tpu.memory_space<vmem>>, vector<128x128xbf16>
    %cst_7 = arith.constant dense<0.000000e+00> : vector<8x128xf32>
    %10 = tpu.matmul %6, %9, %cst_7 {dimension_numbers = #tpu.dot_dimension_numbers<[1], [0], [0], [1], [0, 0, 1, 1], [], []>} : vector<8x128xbf16>, vector<128x128xbf16>, vector<8x128xf32> -> vector<8x128xf32>
    %11 = arith.addf %8, %10 : vector<8x128xf32>
    %c0_8 = arith.constant 0 : index
    %c0_9 = arith.constant 0 : index
    %12 = vector.load %arg10[%c0_8, %c0_9] : memref<1x128xf32, #tpu.memory_space<vmem>>, vector<1x128xf32>
    %13 = vector.broadcast %12 : vector<1x128xf32> to vector<8x128xf32>
    %14 = arith.addf %11, %13 : vector<8x128xf32>
    %c0_10 = arith.constant 0 : index
    %c0_11 = arith.constant 0 : index
    %15 = vector.load %arg7[%c0_10, %c0_11] : memref<8x128xf32, #tpu.memory_space<vmem>>, vector<8x128xf32>
    %c1_i32 = arith.constant 1 : i32
    %16 = tpu.dynamic_rotate %14 by %c1_i32 dim 1 : vector<8x128xf32>, i32 -> vector<8x128xf32>
    %c127_i32 = arith.constant 127 : i32
    %17 = tpu.dynamic_rotate %14 by %c127_i32 dim 1 : vector<8x128xf32>, i32 -> vector<8x128xf32>
    %18 = vector.extract_strided_slice %15 {offsets = [0, 0], sizes = [1, 128], strides = [1, 1]} : vector<8x128xf32> to vector<1x128xf32>
    %19 = vector.broadcast %18 : vector<1x128xf32> to vector<8x128xf32>
    %20 = arith.mulf %16, %19 : vector<8x128xf32>
    %21 = vector.extract_strided_slice %15 {offsets = [1, 0], sizes = [1, 128], strides = [1, 1]} : vector<8x128xf32> to vector<1x128xf32>
    %22 = vector.broadcast %21 : vector<1x128xf32> to vector<8x128xf32>
    %23 = arith.mulf %14, %22 : vector<8x128xf32>
    %24 = arith.addf %20, %23 : vector<8x128xf32>
    %25 = vector.extract_strided_slice %15 {offsets = [2, 0], sizes = [1, 128], strides = [1, 1]} : vector<8x128xf32> to vector<1x128xf32>
    %26 = vector.broadcast %25 : vector<1x128xf32> to vector<8x128xf32>
    %27 = arith.mulf %17, %26 : vector<8x128xf32>
    %28 = arith.addf %24, %27 : vector<8x128xf32>
    %29 = vector.extract_strided_slice %15 {offsets = [3, 0], sizes = [1, 128], strides = [1, 1]} : vector<8x128xf32> to vector<1x128xf32>
    %30 = vector.broadcast %29 : vector<1x128xf32> to vector<8x128xf32>
    %31 = arith.mulf %16, %30 : vector<8x128xf32>
    %32 = arith.subf %28, %31 : vector<8x128xf32>
    %33 = arith.negf %32 : vector<8x128xf32>
    %34 = math.exp %33 : vector<8x128xf32>
    %cst_12 = arith.constant 1.000000e+00 : f32
    %35 = vector.broadcast %cst_12 : f32 to vector<8x128xf32>
    %36 = arith.addf %35, %34 : vector<8x128xf32>
    %37 = arith.divf %35, %36 : vector<8x128xf32>
    %38 = vector.extract_strided_slice %15 {offsets = [4, 0], sizes = [1, 128], strides = [1, 1]} : vector<8x128xf32> to vector<1x128xf32>
    %39 = vector.broadcast %38 : vector<1x128xf32> to vector<8x128xf32>
    %40 = arith.mulf %17, %39 : vector<8x128xf32>
    %41 = arith.subf %28, %40 : vector<8x128xf32>
    %42 = arith.negf %41 : vector<8x128xf32>
    %43 = math.exp %42 : vector<8x128xf32>
    %cst_13 = arith.constant 1.000000e+00 : f32
    %44 = vector.broadcast %cst_13 : f32 to vector<8x128xf32>
    %45 = arith.addf %44, %43 : vector<8x128xf32>
    %46 = arith.divf %44, %45 : vector<8x128xf32>
    %47 = arith.truncf %37 : vector<8x128xf32> to vector<8x128xbf16>
    %c0_14 = arith.constant 0 : index
    %c0_15 = arith.constant 0 : index
    %48 = vector.load %arg11[%c0_14, %c0_15] : memref<128x128xbf16, #tpu.memory_space<vmem>>, vector<128x128xbf16>
    %cst_16 = arith.constant dense<0.000000e+00> : vector<8x128xf32>
    %49 = tpu.matmul %47, %48, %cst_16 {dimension_numbers = #tpu.dot_dimension_numbers<[1], [0], [0], [1], [0, 0, 1, 1], [], []>} : vector<8x128xbf16>, vector<128x128xbf16>, vector<8x128xf32> -> vector<8x128xf32>
    %50 = arith.truncf %46 : vector<8x128xf32> to vector<8x128xbf16>
    %c0_17 = arith.constant 0 : index
    %c0_18 = arith.constant 0 : index
    %51 = vector.load %arg12[%c0_17, %c0_18] : memref<128x128xbf16, #tpu.memory_space<vmem>>, vector<128x128xbf16>
    %cst_19 = arith.constant dense<0.000000e+00> : vector<8x128xf32>
    %52 = tpu.matmul %50, %51, %cst_19 {dimension_numbers = #tpu.dot_dimension_numbers<[1], [0], [0], [1], [0, 0, 1, 1], [], []>} : vector<8x128xbf16>, vector<128x128xbf16>, vector<8x128xf32> -> vector<8x128xf32>
    %53 = arith.addf %49, %52 : vector<8x128xf32>
    %c0_20 = arith.constant 0 : index
    %c0_21 = arith.constant 0 : index
    %54 = vector.load %arg13[%c0_20, %c0_21] : memref<1x128xf32, #tpu.memory_space<vmem>>, vector<1x128xf32>
    %55 = vector.broadcast %54 : vector<1x128xf32> to vector<8x128xf32>
    %56 = arith.addf %53, %55 : vector<8x128xf32>
    %c0_22 = arith.constant 0 : index
    %c0_23 = arith.constant 0 : index
    %57 = vector.load %arg14[%c0_22, %c0_23] : memref<128x128xbf16, #tpu.memory_space<vmem>>, vector<128x128xbf16>
    %cst_24 = arith.constant dense<0.000000e+00> : vector<8x128xf32>
    %58 = tpu.matmul %5, %57, %cst_24 {dimension_numbers = #tpu.dot_dimension_numbers<[1], [0], [0], [1], [0, 0, 1, 1], [], []>} : vector<8x128xbf16>, vector<128x128xbf16>, vector<8x128xf32> -> vector<8x128xf32>
    %c0_25 = arith.constant 0 : index
    %c0_26 = arith.constant 0 : index
    %59 = vector.load %arg15[%c0_25, %c0_26] : memref<1x128xf32, #tpu.memory_space<vmem>>, vector<1x128xf32>
    %60 = vector.broadcast %59 : vector<1x128xf32> to vector<8x128xf32>
    %61 = arith.addf %58, %60 : vector<8x128xf32>
    %cst_27 = arith.constant 0.000000e+00 : f32
    %62 = vector.broadcast %cst_27 : f32 to vector<8x128xf32>
    %63 = arith.maximumf %61, %62 : vector<8x128xf32>
    %c0_28 = arith.constant 0 : index
    %c0_29 = arith.constant 0 : index
    %64 = vector.load %arg16[%c0_28, %c0_29] : memref<128x128xbf16, #tpu.memory_space<vmem>>, vector<128x128xbf16>
    %cst_30 = arith.constant dense<0.000000e+00> : vector<8x128xf32>
    %65 = tpu.matmul %6, %64, %cst_30 {dimension_numbers = #tpu.dot_dimension_numbers<[1], [0], [0], [1], [0, 0, 1, 1], [], []>} : vector<8x128xbf16>, vector<128x128xbf16>, vector<8x128xf32> -> vector<8x128xf32>
    %c0_31 = arith.constant 0 : index
    %c0_32 = arith.constant 0 : index
    %66 = vector.load %arg17[%c0_31, %c0_32] : memref<1x128xf32, #tpu.memory_space<vmem>>, vector<1x128xf32>
    %67 = vector.broadcast %66 : vector<1x128xf32> to vector<8x128xf32>
    %68 = arith.addf %65, %67 : vector<8x128xf32>
    %cst_33 = arith.constant 0.000000e+00 : f32
    %69 = vector.broadcast %cst_33 : f32 to vector<8x128xf32>
    %70 = arith.maximumf %68, %69 : vector<8x128xf32>
    %71 = arith.mulf %56, %63 : vector<8x128xf32>
    %72 = arith.addf %71, %3 : vector<8x128xf32>
    %cst_34 = arith.constant 1.000000e+00 : f32
    %73 = vector.broadcast %cst_34 : f32 to vector<8x128xf32>
    %74 = arith.subf %73, %56 : vector<8x128xf32>
    %75 = arith.mulf %74, %70 : vector<8x128xf32>
    %76 = arith.addf %72, %75 : vector<8x128xf32>
    %77 = arith.addf %76, %4 : vector<8x128xf32>
    %c0_35 = arith.constant 0 : index
    %c0_36 = arith.constant 0 : index
    %78 = vector.load %arg18[%c0_35, %c0_36] : memref<8x128xf32, #tpu.memory_space<vmem>>, vector<8x128xf32>
    tpu.vector_store %arg18[%c0_35, %c0_36], %77 {strides = array<i32>} : memref<8x128xf32, #tpu.memory_space<vmem>>, vector<8x128xf32>,
    %c0_i32 = arith.constant 0 : i32
    %79 = arith.cmpi eq, %arg1, %c0_i32 : i32
    %80 = arith.extui %79 : i1 to i32
    %c0_i32_37 = arith.constant 0 : i32
    %81 = arith.cmpi ne, %80, %c0_i32_37 : i32
    scf.if %81 {
      %cst_41 = arith.constant -1.000000e+30 : f32
      %92 = vector.broadcast %cst_41 : f32 to vector<8x128xf32>
      %c0_42 = arith.constant 0 : index
      %c0_43 = arith.constant 0 : index
      %93 = vector.load %arg19[%c0_42, %c0_43] : memref<8x128xf32, #tpu.memory_space<vmem>>, vector<8x128xf32>
      tpu.vector_store %arg19[%c0_42, %c0_43], %92 {strides = array<i32>} : memref<8x128xf32, #tpu.memory_space<vmem>>, vector<8x128xf32>,
    } else {
    }
    %82 = arith.index_cast %1 : i32 to index
    %83 = memref.load %arg3[%82] : memref<4xi32, #tpu.memory_space<smem>>
    %84 = arith.index_cast %1 : i32 to index
    %85 = memref.load %arg4[%84] : memref<4xi32, #tpu.memory_space<smem>>
    %86 = tpu.iota {dimensions = array<i32: 0>} : vector<8x1xi32>
    %87 = vector.broadcast %2 : i32 to vector<8x1xi32>
    %88 = arith.addi %86, %87 : vector<8x1xi32>
    %c1_i32_38 = arith.constant 1 : i32
    %89 = arith.addi %85, %c1_i32_38 : i32
    %c0_i32_39 = arith.constant 0 : i32
    %90 = arith.subi %89, %83 : i32
    %91 = arith.addi %83, %90 : i32
    %c1_i32_40 = arith.constant 1 : i32
    scf.for %arg20 = %83 to %91 step %c1_i32_40  : i32 {
      %92 = arith.index_cast %arg20 : i32 to index
      %93 = memref.load %arg2[%92] : memref<9xi32, #tpu.memory_space<smem>>
      %c1_i32_41 = arith.constant 1 : i32
      %94 = arith.addi %arg20, %c1_i32_41 : i32
      %95 = arith.index_cast %94 : i32 to index
      %96 = memref.load %arg2[%95] : memref<9xi32, #tpu.memory_space<smem>>
      %97 = vector.broadcast %93 : i32 to vector<8x1xi32>
      %98 = arith.cmpi sge, %88, %97 : vector<8x1xi32>
      %99 = vector.broadcast %96 : i32 to vector<8x1xi32>
      %100 = arith.cmpi slt, %88, %99 : vector<8x1xi32>
      %101 = arith.andi %98, %100 : vector<8x1xi1>
      %cst_42 = arith.constant -1.000000e+30 : f32
      %102 = vector.shape_cast %101 : vector<8x1xi1> to vector<8x1xi1>
      %103 = vector.broadcast %102 : vector<8x1xi1> to vector<8x128xi1>
      %104 = vector.broadcast %cst_42 : f32 to vector<8x128xf32>
      %105 = arith.select %103, %77, %104 : vector<8x128xi1>, vector<8x128xf32>
      %cst_43 = arith.constant dense<0xFF800000> : vector<128xf32>
      %106 = vector.multi_reduction <maximumf>, %105, %cst_43 [0] : vector<8x128xf32> to vector<128xf32>
      %107 = vector.shape_cast %106 : vector<128xf32> to vector<1x128xf32>
      %108 = arith.index_cast %arg20 : i32 to index
      %c0_44 = arith.constant 0 : index
      %109 = vector.load %arg19[%108, %c0_44] : memref<8x128xf32, #tpu.memory_space<vmem>>, vector<1x128xf32>
      %110 = arith.maximumf %109, %107 : vector<1x128xf32>
      %111 = arith.index_cast %arg20 : i32 to index
      %c0_45 = arith.constant 0 : index
      %112 = vector.load %arg19[%111, %c0_45] : memref<8x128xf32, #tpu.memory_space<vmem>>, vector<1x128xf32>
      tpu.vector_store %arg19[%111, %c0_45], %110 {strides = array<i32>} : memref<8x128xf32, #tpu.memory_space<vmem>>, vector<1x128xf32>,
    }
    return
  }
  func.func @transform_0(%arg0: i32, %arg1: i32, %arg2: memref<9xi32, #tpu.memory_space<smem>>, %arg3: memref<4xi32, #tpu.memory_space<smem>>, %arg4: memref<4xi32, #tpu.memory_space<smem>>) -> (i32, i32) {
    %c2_i32 = arith.constant 2 : i32
    %0 = arith.muli %arg0, %c2_i32 : i32
    %1 = arith.addi %0, %arg1 : i32
    %c0_i32 = arith.constant 0 : i32
    %c0_i32_0 = arith.constant 0 : i32
    return %1, %c0_i32 : i32, i32
  }
  func.func @transform_1(%arg0: i32, %arg1: i32, %arg2: memref<9xi32, #tpu.memory_space<smem>>, %arg3: memref<4xi32, #tpu.memory_space<smem>>, %arg4: memref<4xi32, #tpu.memory_space<smem>>) -> (i32, i32) {
    %c2_i32 = arith.constant 2 : i32
    %0 = arith.muli %arg0, %c2_i32 : i32
    %1 = arith.addi %0, %arg1 : i32
    %c0_i32 = arith.constant 0 : i32
    %c0_i32_0 = arith.constant 0 : i32
    return %1, %c0_i32 : i32, i32
  }
  func.func @transform_2(%arg0: i32, %arg1: i32, %arg2: memref<9xi32, #tpu.memory_space<smem>>, %arg3: memref<4xi32, #tpu.memory_space<smem>>, %arg4: memref<4xi32, #tpu.memory_space<smem>>) -> (i32, i32) {
    %c0_i32 = arith.constant 0 : i32
    %c0_i32_0 = arith.constant 0 : i32
    %c0_i32_1 = arith.constant 0 : i32
    return %c0_i32, %c0_i32_0 : i32, i32
  }
  func.func @transform_3(%arg0: i32, %arg1: i32, %arg2: memref<9xi32, #tpu.memory_space<smem>>, %arg3: memref<4xi32, #tpu.memory_space<smem>>, %arg4: memref<4xi32, #tpu.memory_space<smem>>) -> (i32, i32) {
    %c0_i32 = arith.constant 0 : i32
    %c0_i32_0 = arith.constant 0 : i32
    %c0_i32_1 = arith.constant 0 : i32
    return %c0_i32, %c0_i32_0 : i32, i32
  }
  func.func @transform_4(%arg0: i32, %arg1: i32, %arg2: memref<9xi32, #tpu.memory_space<smem>>, %arg3: memref<4xi32, #tpu.memory_space<smem>>, %arg4: memref<4xi32, #tpu.memory_space<smem>>) -> (i32, i32) {
    %c0_i32 = arith.constant 0 : i32
    %c0_i32_0 = arith.constant 0 : i32
    %c0_i32_1 = arith.constant 0 : i32
    return %c0_i32, %c0_i32_0 : i32, i32
  }
  func.func @transform_5(%arg0: i32, %arg1: i32, %arg2: memref<9xi32, #tpu.memory_space<smem>>, %arg3: memref<4xi32, #tpu.memory_space<smem>>, %arg4: memref<4xi32, #tpu.memory_space<smem>>) -> (i32, i32) {
    %c0_i32 = arith.constant 0 : i32
    %c0_i32_0 = arith.constant 0 : i32
    %c0_i32_1 = arith.constant 0 : i32
    return %c0_i32, %c0_i32_0 : i32, i32
  }
  func.func @transform_6(%arg0: i32, %arg1: i32, %arg2: memref<9xi32, #tpu.memory_space<smem>>, %arg3: memref<4xi32, #tpu.memory_space<smem>>, %arg4: memref<4xi32, #tpu.memory_space<smem>>) -> (i32, i32) {
    %c0_i32 = arith.constant 0 : i32
    %c0_i32_0 = arith.constant 0 : i32
    %c0_i32_1 = arith.constant 0 : i32
    return %c0_i32, %c0_i32_0 : i32, i32
  }
  func.func @transform_7(%arg0: i32, %arg1: i32, %arg2: memref<9xi32, #tpu.memory_space<smem>>, %arg3: memref<4xi32, #tpu.memory_space<smem>>, %arg4: memref<4xi32, #tpu.memory_space<smem>>) -> (i32, i32) {
    %c0_i32 = arith.constant 0 : i32
    %c0_i32_0 = arith.constant 0 : i32
    %c0_i32_1 = arith.constant 0 : i32
    return %c0_i32, %c0_i32_0 : i32, i32
  }
  func.func @transform_8(%arg0: i32, %arg1: i32, %arg2: memref<9xi32, #tpu.memory_space<smem>>, %arg3: memref<4xi32, #tpu.memory_space<smem>>, %arg4: memref<4xi32, #tpu.memory_space<smem>>) -> (i32, i32) {
    %c0_i32 = arith.constant 0 : i32
    %c0_i32_0 = arith.constant 0 : i32
    %c0_i32_1 = arith.constant 0 : i32
    return %c0_i32, %c0_i32_0 : i32, i32
  }
  func.func @transform_9(%arg0: i32, %arg1: i32, %arg2: memref<9xi32, #tpu.memory_space<smem>>, %arg3: memref<4xi32, #tpu.memory_space<smem>>, %arg4: memref<4xi32, #tpu.memory_space<smem>>) -> (i32, i32) {
    %c0_i32 = arith.constant 0 : i32
    %c0_i32_0 = arith.constant 0 : i32
    %c0_i32_1 = arith.constant 0 : i32
    return %c0_i32, %c0_i32_0 : i32, i32
  }
  func.func @transform_10(%arg0: i32, %arg1: i32, %arg2: memref<9xi32, #tpu.memory_space<smem>>, %arg3: memref<4xi32, #tpu.memory_space<smem>>, %arg4: memref<4xi32, #tpu.memory_space<smem>>) -> (i32, i32) {
    %c0_i32 = arith.constant 0 : i32
    %c0_i32_0 = arith.constant 0 : i32
    %c0_i32_1 = arith.constant 0 : i32
    return %c0_i32, %c0_i32_0 : i32, i32
  }
  func.func @transform_11(%arg0: i32, %arg1: i32, %arg2: memref<9xi32, #tpu.memory_space<smem>>, %arg3: memref<4xi32, #tpu.memory_space<smem>>, %arg4: memref<4xi32, #tpu.memory_space<smem>>) -> (i32, i32) {
    %c0_i32 = arith.constant 0 : i32
    %c0_i32_0 = arith.constant 0 : i32
    %c0_i32_1 = arith.constant 0 : i32
    return %c0_i32, %c0_i32_0 : i32, i32
  }
  func.func @transform_12(%arg0: i32, %arg1: i32, %arg2: memref<9xi32, #tpu.memory_space<smem>>, %arg3: memref<4xi32, #tpu.memory_space<smem>>, %arg4: memref<4xi32, #tpu.memory_space<smem>>) -> (i32, i32) {
    %c0_i32 = arith.constant 0 : i32
    %c0_i32_0 = arith.constant 0 : i32
    %c0_i32_1 = arith.constant 0 : i32
    return %c0_i32, %c0_i32_0 : i32, i32
  }
  func.func @transform_13(%arg0: i32, %arg1: i32, %arg2: memref<9xi32, #tpu.memory_space<smem>>, %arg3: memref<4xi32, #tpu.memory_space<smem>>, %arg4: memref<4xi32, #tpu.memory_space<smem>>) -> (i32, i32) {
    %c2_i32 = arith.constant 2 : i32
    %0 = arith.muli %arg0, %c2_i32 : i32
    %1 = arith.addi %0, %arg1 : i32
    %c0_i32 = arith.constant 0 : i32
    %c0_i32_0 = arith.constant 0 : i32
    return %1, %c0_i32 : i32, i32
  }
  func.func @transform_14(%arg0: i32, %arg1: i32, %arg2: memref<9xi32, #tpu.memory_space<smem>>, %arg3: memref<4xi32, #tpu.memory_space<smem>>, %arg4: memref<4xi32, #tpu.memory_space<smem>>) -> (i32, i32) {
    %c0_i32 = arith.constant 0 : i32
    %c0_i32_0 = arith.constant 0 : i32
    return %arg0, %c0_i32 : i32, i32
  }
}

</mosaic_0001>

<llo_original>
// kernel: tpu_custom_call.1
$region0: #{tpu_custom_call.1}
  #allocation0 [shape = 'u32[]', space=smem, size = 0x4, offset = 0x4, fixed_abs, tag = 'smem constant byte address 0x4 - core index']
  #allocation1 [shape = 'u32[144,128]{1,0:T(1,128)}', space=vmem, size = 0x12000, scoped, tag = 'internal scratch']
  #allocation2 [shape = 's32[1]{0}', space=sflag, size = 0x4, scoped, tag = 'scoped memory for tpu_custom_call.1']
  #allocation3 [shape = 'u8[512]{0}', space=smem, size = 0x200, scoped, tag = 'prefetched SMEM operand 0']
  #allocation4 [shape = 'u8[512]{0}', space=smem, size = 0x200, scoped, tag = 'prefetched SMEM operand 1']
  #allocation5 [shape = 'u8[512]{0}', space=smem, size = 0x200, scoped, tag = 'prefetched SMEM operand 2']
  %s0 = inlined_call_operand.hbm [shape: s32[9], index: 0, kind: input, shape index: {}]
  %s1 = inlined_call_operand.vmem [shape: s32[4], index: 1, kind: input, shape index: {}]
  %s2 = inlined_call_operand.hbm [shape: s32[4], index: 2, kind: input, shape index: {}]
  %s3 = inlined_call_operand.hbm [shape: f32[32,128], index: 3, kind: input, shape index: {}]
  %s4 = inlined_call_operand.hbm [shape: f32[32,128], index: 4, kind: input, shape index: {}]
  %s5 = inlined_call_operand.vmem [shape: f32[8,128], index: 5, kind: input, shape index: {}]
  %s6 = inlined_call_operand.hbm [shape: bf16[128,128], index: 6, kind: input, shape index: {}]
  %s7 = inlined_call_operand.hbm [shape: bf16[128,128], index: 7, kind: input, shape index: {}]
  %s8 = inlined_call_operand.vmem [shape: f32[1,128], index: 8, kind: input, shape index: {}]
  %s9 = inlined_call_operand.hbm [shape: bf16[128,128], index: 9, kind: input, shape index: {}]
  %s10 = inlined_call_operand.hbm [shape: bf16[128,128], index: 10, kind: input, shape index: {}]
  %s11 = inlined_call_operand.vmem [shape: f32[1,128], index: 11, kind: input, shape index: {}]
  %s12 = inlined_call_operand.hbm [shape: bf16[128,128], index: 12, kind: input, shape index: {}]
  %s13 = inlined_call_operand.vmem [shape: f32[1,128], index: 13, kind: input, shape index: {}]
  %s14 = inlined_call_operand.hbm [shape: bf16[128,128], index: 14, kind: input, shape index: {}]
  %s15 = inlined_call_operand.vmem [shape: f32[1,128], index: 15, kind: input, shape index: {}]
  %s16 = inlined_call_operand.hbm [shape: f32[32,128], index: 16, kind: output, shape index: {0}]
  %s17 = inlined_call_operand.hbm [shape: f32[16,128], index: 17, kind: output, shape index: {1}]
  %18 = xla_tuple %s16, %s17
  %s19 = sld [smem:[#allocation0]]
  $region136: #{tpu_custom_call.1} parent=0
    _
  %s21 = ssub.s32 1, %s19
  %s22 = scalar_select 0, %s21, %s19
  %24 = dma.hbm_to_smem %s0, 16, [#allocation3], [#allocation2]
  %s25 = sshll.u32 %s1, 4
  %s26 = int_to_ptr.vmem [resolvable:$true] %s25
  %28 = dma.vmem_to_smem %s26, 16, [#allocation4], [#allocation2]
  %30 = dma.hbm_to_smem %s2, 16, [#allocation5], [#allocation2]
  %31 = dma.done [#allocation2], 48
  %32 = sfence
  $region1: #{tpu_custom_call.1} parent=0
    #allocation6 [shape = 'u8[8192]{0}', space=vmem, size = 0x2000, scoped, tag = 'input window, operand 3']
    #allocation7 [shape = 's32[2]{0}', space=sflag, size = 0x8, scoped, tag = 'scoped memory for tpu_custom_call.1']
    #allocation8 [shape = 's32[2]{0}', space=sflag, size = 0x8, scoped, tag = 'scoped memory for tpu_custom_call.1']
    #allocation9 [shape = 'u8[8192]{0}', space=vmem, size = 0x2000, scoped, tag = 'input window, operand 4']
    #allocation10 [shape = 's32[2]{0}', space=sflag, size = 0x8, scoped, tag = 'scoped memory for tpu_custom_call.1']
    #allocation11 [shape = 'u8[32768]{0}', space=vmem, size = 0x8000, scoped, tag = 'input window, operand 6, single buffered']
    #allocation12 [shape = 'u8[32768]{0}', space=vmem, size = 0x8000, scoped, tag = 'input window, operand 7, single buffered']
    #allocation13 [shape = 's32[1]{0}', space=sflag, size = 0x4, scoped, tag = 'scoped memory for tpu_custom_call.1']
    #allocation14 [shape = 'u8[32768]{0}', space=vmem, size = 0x8000, scoped, tag = 'input window, operand 9, single buffered']
    #allocation15 [shape = 'u8[32768]{0}', space=vmem, size = 0x8000, scoped, tag = 'input window, operand 10, single buffered']
    #allocation16 [shape = 's32[1]{0}', space=sflag, size = 0x4, scoped, tag = 'scoped memory for tpu_custom_call.1']
    #allocation17 [shape = 'u8[32768]{0}', space=vmem, size = 0x8000, scoped, tag = 'input window, operand 12, single buffered']
    #allocation18 [shape = 'u8[32768]{0}', space=vmem, size = 0x8000, scoped, tag = 'input window, operand 14, single buffered']
    #allocation19 [shape = 's32[1]{0}', space=sflag, size = 0x4, scoped, tag = 'scoped memory for tpu_custom_call.1']
    #allocation20 [shape = 'u8[8192]{0}', space=vmem, size = 0x2000, scoped, tag = 'output window, operand 0']
    #allocation21 [shape = 'u8[8192]{0}', space=vmem, size = 0x2000, scoped, tag = 'output window, operand 1']
    #allocation22 [shape = 's32[2]{0}', space=sflag, size = 0x8, scoped, tag = 'scoped memory for tpu_custom_call.1']
    %33 = vsyncpa [#allocation7], 0
    %s34 = scalar_lea.sflag [#allocation7], 1
    %35 = vsyncpa %s34, 0
    %36 = vsyncpa [#allocation10], 0
    %s37 = scalar_lea.sflag [#allocation10], 1
    %38 = vsyncpa %s37, 0
    %39 = vsyncpa [#allocation13], 0
    %40 = vsyncpa [#allocation16], 0
    %41 = vsyncpa [#allocation19], 0
    %42 = vsyncpa [#allocation8], 0
    %s43 = scalar_lea.sflag [#allocation8], 1
    %44 = vsyncpa %s43, 0
    %45 = vsyncpa [#allocation22], 0
    %s46 = scalar_lea.sflag [#allocation22], 1
    %47 = vsyncpa %s46, 0
    loop: start=0, step=1, limit=6
    $region2: #{tpu_custom_call.1} parent=1 // loop_pre_header
      _
    $region3: #{tpu_custom_call.1} parent=1 // loop_header
      %s49 = sphi 0, %s53
      %p50 = scmp.ge.s32.totalorder %s49, 6
      %s56 = sphi 0, %s68
      %s57 = sphi 0, %s64
      %s58 = sphi 0, %s56
      %s59 = sphi 0, %s57
      %s60 = sphi 0, %s58
      %s61 = sphi 0, %s59
      %s75 = sphi 0, %s77
      %s78 = sphi 0, %s75
      %s79 = sphi 0, %s78
      %s95 = sphi 0, %s79
      %s105 = sphi 0, %s107
      %s108 = sphi 0, %s105
      %s109 = sphi 0, %s108
      %s125 = sphi 0, %s109
      %s129 = sphi 0, %s129
      %s131 = sphi 0, %s129
      %s132 = sphi 0, %s131
      %s146 = sphi 0, %s132
      %s150 = sphi 0, %s150
      %s152 = sphi 0, %s150
      %s153 = sphi 0, %s152
      %s167 = sphi 0, %s153
      %s171 = sphi 0, %s171
      %s173 = sphi 0, %s171
      %s174 = sphi 0, %s173
      %s188 = sphi 0, %s174
      %s192 = sphi 0, %s192
      %s194 = sphi 0, %s192
      %s195 = sphi 0, %s194
      %s209 = sphi 0, %s195
      %s213 = sphi 0, %s213
      %s215 = sphi 0, %s213
      %s216 = sphi 0, %s215
      %s230 = sphi 0, %s216
      %s234 = sphi 0, %s234
      %s236 = sphi 0, %s234
      %s237 = sphi 0, %s236
      %s251 = sphi 0, %s237
      %s255 = sphi 0, %s255
      %s257 = sphi 0, %s255
      %s258 = sphi 0, %s257
      %s272 = sphi 0, %s258
      %s276 = sphi 0, %s276
      %s278 = sphi 0, %s276
      %s279 = sphi 0, %s278
      %s293 = sphi 0, %s279
      %s297 = sphi 0, %s297
      %s299 = sphi 0, %s297
      %s300 = sphi 0, %s299
      %s314 = sphi 0, %s300
      %s318 = sphi 0, %s318
      %s320 = sphi 0, %s318
      %s321 = sphi 0, %s320
      %s335 = sphi 0, %s321
      %s339 = sphi 0, %s339
      %s341 = sphi 0, %s339
      %s342 = sphi 0, %s341
      %s356 = sphi 0, %s342
      %s366 = sphi 0, %s368
      %s369 = sphi 0, %s366
      %s370 = sphi 0, %s369
      %s386 = sphi 0, %s370
      %s392 = sphi 0, %s394
      %s395 = sphi 0, %s392
      %s396 = sphi 0, %s395
      %s412 = sphi 0, %s396
    $region4: #{tpu_custom_call.1} parent=1 // loop_header_branch
      %52 = sbr.rel (%p50) target = $region8
    $region5: #{tpu_custom_call.1} parent=1 // loop_body
      %s54 = ssub.s32 %s49, 1
      %s55 = ssub.s32 %s49, 2
      %s62 = sadd.s32 1, %s57
      %p63 = scmp.ge.s32.totalorder %s62, 2
      %s64 = scalar_select %p63, 0, %s62
      %s65 = sadd.s32 1, %s56
      %s66 = scalar_select %p63, %s65, %s56
      %p67 = scmp.ge.s32.totalorder %s66, 2
      %s68 = scalar_select %p67, 0, %s66
      %s69 = smul.u32 %s56, 2
      %s70 = sadd.s32 %s69, %s57
      %s71 = smul.u32 %s68, 2
      %s72 = sadd.s32 %s71, %s64
      %s73 = ssub.s32 %s70, %s72
      %p74 = scmp.eq.s32.totalorder %s73, 0
      %s76 = sadd.s32 %s75, 1
      %s77 = scalar_select %p74, %s75, %s76
      %p80 = pneg %p74
      %p81 = scmp.eq.s32.totalorder %s49, 3
      %p82 = por %p80, %p81
      %p83 = scmp.ne.s32.totalorder %s75, %s78
      %p84 = scmp.eq.s32.totalorder %s49, 0
      %p85 = por %p83, %p84
      %p86 = scmp.ne.s32.totalorder %s75, %s78
      %p87 = scmp.eq.s32.totalorder %s54, 3
      %p88 = por %p86, %p87
      %p89 = scmp.ne.s32.totalorder %s78, %s79
      %p90 = scmp.eq.s32.totalorder %s54, 0
      %p91 = por %p89, %p90
      %p92 = scmp.ne.s32.totalorder %s78, %s79
      %p93 = scmp.eq.s32.totalorder %s55, 3
      %p94 = por %p92, %p93
      %p96 = scmp.ne.s32.totalorder %s79, %s95
      %p97 = scmp.eq.s32.totalorder %s55, 0
      %p98 = por %p96, %p97
      %s99 = smul.u32 %s56, 2
      %s100 = sadd.s32 %s99, %s57
      %s101 = smul.u32 %s68, 2
      %s102 = sadd.s32 %s101, %s64
      %s103 = ssub.s32 %s100, %s102
      %p104 = scmp.eq.s32.totalorder %s103, 0
      %s106 = sadd.s32 %s105, 1
      %s107 = scalar_select %p104, %s105, %s106
      %p110 = pneg %p104
      %p111 = scmp.eq.s32.totalorder %s49, 3
      %p112 = por %p110, %p111
      %p113 = scmp.ne.s32.totalorder %s105, %s108
      %p114 = scmp.eq.s32.totalorder %s49, 0
      %p115 = por %p113, %p114
      %p116 = scmp.ne.s32.totalorder %s105, %s108
      %p117 = scmp.eq.s32.totalorder %s54, 3
      %p118 = por %p116, %p117
      %p119 = scmp.ne.s32.totalorder %s108, %s109
      %p120 = scmp.eq.s32.totalorder %s54, 0
      %p121 = por %p119, %p120
      %p122 = scmp.ne.s32.totalorder %s108, %s109
      %p123 = scmp.eq.s32.totalorder %s55, 3
      %p124 = por %p122, %p123
      %p126 = scmp.ne.s32.totalorder %s109, %s125
      %p127 = scmp.eq.s32.totalorder %s55, 0
      %p128 = por %p126, %p127
      %s130 = sadd.s32 %s129, 1
      %p133 = scmp.eq.s32.totalorder %s49, 3
      %p134 = scmp.ne.s32.totalorder %s129, %s131
      %p135 = scmp.eq.s32.totalorder %s49, 0
      %p136 = por %p134, %p135
      %p137 = scmp.ne.s32.totalorder %s129, %s131
      %p138 = scmp.eq.s32.totalorder %s54, 3
      %p139 = por %p137, %p138
      %p140 = scmp.ne.s32.totalorder %s131, %s132
      %p141 = scmp.eq.s32.totalorder %s54, 0
      %p142 = por %p140, %p141
      %p143 = scmp.ne.s32.totalorder %s131, %s132
      %p144 = scmp.eq.s32.totalorder %s55, 3
      %p145 = por %p143, %p144
      %p147 = scmp.ne.s32.totalorder %s132, %s146
      %p148 = scmp.eq.s32.totalorder %s55, 0
      %p149 = por %p147, %p148
      %s151 = sadd.s32 %s150, 1
      %p154 = scmp.eq.s32.totalorder %s49, 3
      %p155 = scmp.ne.s32.totalorder %s150, %s152
      %p156 = scmp.eq.s32.totalorder %s49, 0
      %p157 = por %p155, %p156
      %p158 = scmp.ne.s32.totalorder %s150, %s152
      %p159 = scmp.eq.s32.totalorder %s54, 3
      %p160 = por %p158, %p159
      %p161 = scmp.ne.s32.totalorder %s152, %s153
      %p162 = scmp.eq.s32.totalorder %s54, 0
      %p163 = por %p161, %p162
      %p164 = scmp.ne.s32.totalorder %s152, %s153
      %p165 = scmp.eq.s32.totalorder %s55, 3
      %p166 = por %p164, %p165
      %p168 = scmp.ne.s32.totalorder %s153, %s167
      %p169 = scmp.eq.s32.totalorder %s55, 0
      %p170 = por %p168, %p169
      %s172 = sadd.s32 %s171, 1
      %p175 = scmp.eq.s32.totalorder %s49, 3
      %p176 = scmp.ne.s32.totalorder %s171, %s173
      %p177 = scmp.eq.s32.totalorder %s49, 0
      %p178 = por %p176, %p177
      %p179 = scmp.ne.s32.totalorder %s171, %s173
      %p180 = scmp.eq.s32.totalorder %s54, 3
      %p181 = por %p179, %p180
      %p182 = scmp.ne.s32.totalorder %s173, %s174
      %p183 = scmp.eq.s32.totalorder %s54, 0
      %p184 = por %p182, %p183
      %p185 = scmp.ne.s32.totalorder %s173, %s174
      %p186 = scmp.eq.s32.totalorder %s55, 3
      %p187 = por %p185, %p186
      %p189 = scmp.ne.s32.totalorder %s174, %s188
      %p190 = scmp.eq.s32.totalorder %s55, 0
      %p191 = por %p189, %p190
      %s193 = sadd.s32 %s192, 1
      %p196 = scmp.eq.s32.totalorder %s49, 3
      %p197 = scmp.ne.s32.totalorder %s192, %s194
      %p198 = scmp.eq.s32.totalorder %s49, 0
      %p199 = por %p197, %p198
      %p200 = scmp.ne.s32.totalorder %s192, %s194
      %p201 = scmp.eq.s32.totalorder %s54, 3
      %p202 = por %p200, %p201
      %p203 = scmp.ne.s32.totalorder %s194, %s195
      %p204 = scmp.eq.s32.totalorder %s54, 0
      %p205 = por %p203, %p204
      %p206 = scmp.ne.s32.totalorder %s194, %s195
      %p207 = scmp.eq.s32.totalorder %s55, 3
      %p208 = por %p206, %p207
      %p210 = scmp.ne.s32.totalorder %s195, %s209
      %p211 = scmp.eq.s32.totalorder %s55, 0
      %p212 = por %p210, %p211
      %s214 = sadd.s32 %s213, 1
      %p217 = scmp.eq.s32.totalorder %s49, 3
      %p218 = scmp.ne.s32.totalorder %s213, %s215
      %p219 = scmp.eq.s32.totalorder %s49, 0
      %p220 = por %p218, %p219
      %p221 = scmp.ne.s32.totalorder %s213, %s215
      %p222 = scmp.eq.s32.totalorder %s54, 3
      %p223 = por %p221, %p222
      %p224 = scmp.ne.s32.totalorder %s215, %s216
      %p225 = scmp.eq.s32.totalorder %s54, 0
      %p226 = por %p224, %p225
      %p227 = scmp.ne.s32.totalorder %s215, %s216
      %p228 = scmp.eq.s32.totalorder %s55, 3
      %p229 = por %p227, %p228
      %p231 = scmp.ne.s32.totalorder %s216, %s230
      %p232 = scmp.eq.s32.totalorder %s55, 0
      %p233 = por %p231, %p232
      %s235 = sadd.s32 %s234, 1
      %p238 = scmp.eq.s32.totalorder %s49, 3
      %p239 = scmp.ne.s32.totalorder %s234, %s236
      %p240 = scmp.eq.s32.totalorder %s49, 0
      %p241 = por %p239, %p240
      %p242 = scmp.ne.s32.totalorder %s234, %s236
      %p243 = scmp.eq.s32.totalorder %s54, 3
      %p244 = por %p242, %p243
      %p245 = scmp.ne.s32.totalorder %s236, %s237
      %p246 = scmp.eq.s32.totalorder %s54, 0
      %p247 = por %p245, %p246
      %p248 = scmp.ne.s32.totalorder %s236, %s237
      %p249 = scmp.eq.s32.totalorder %s55, 3
      %p250 = por %p248, %p249
      %p252 = scmp.ne.s32.totalorder %s237, %s251
      %p253 = scmp.eq.s32.totalorder %s55, 0
      %p254 = por %p252, %p253
      %s256 = sadd.s32 %s255, 1
      %p259 = scmp.eq.s32.totalorder %s49, 3
      %p260 = scmp.ne.s32.totalorder %s255, %s257
      %p261 = scmp.eq.s32.totalorder %s49, 0
      %p262 = por %p260, %p261
      %p263 = scmp.ne.s32.totalorder %s255, %s257
      %p264 = scmp.eq.s32.totalorder %s54, 3
      %p265 = por %p263, %p264
      %p266 = scmp.ne.s32.totalorder %s257, %s258
      %p267 = scmp.eq.s32.totalorder %s54, 0
      %p268 = por %p266, %p267
      %p269 = scmp.ne.s32.totalorder %s257, %s258
      %p270 = scmp.eq.s32.totalorder %s55, 3
      %p271 = por %p269, %p270
      %p273 = scmp.ne.s32.totalorder %s258, %s272
      %p274 = scmp.eq.s32.totalorder %s55, 0
      %p275 = por %p273, %p274
      %s277 = sadd.s32 %s276, 1
      %p280 = scmp.eq.s32.totalorder %s49, 3
      %p281 = scmp.ne.s32.totalorder %s276, %s278
      %p282 = scmp.eq.s32.totalorder %s49, 0
      %p283 = por %p281, %p282
      %p284 = scmp.ne.s32.totalorder %s276, %s278
      %p285 = scmp.eq.s32.totalorder %s54, 3
      %p286 = por %p284, %p285
      %p287 = scmp.ne.s32.totalorder %s278, %s279
      %p288 = scmp.eq.s32.totalorder %s54, 0
      %p289 = por %p287, %p288
      %p290 = scmp.ne.s32.totalorder %s278, %s279
      %p291 = scmp.eq.s32.totalorder %s55, 3
      %p292 = por %p290, %p291
      %p294 = scmp.ne.s32.totalorder %s279, %s293
      %p295 = scmp.eq.s32.totalorder %s55, 0
      %p296 = por %p294, %p295
      %s298 = sadd.s32 %s297, 1
      %p301 = scmp.eq.s32.totalorder %s49, 3
      %p302 = scmp.ne.s32.totalorder %s297, %s299
      %p303 = scmp.eq.s32.totalorder %s49, 0
      %p304 = por %p302, %p303
      %p305 = scmp.ne.s32.totalorder %s297, %s299
      %p306 = scmp.eq.s32.totalorder %s54, 3
      %p307 = por %p305, %p306
      %p308 = scmp.ne.s32.totalorder %s299, %s300
      %p309 = scmp.eq.s32.totalorder %s54, 0
      %p310 = por %p308, %p309
      %p311 = scmp.ne.s32.totalorder %s299, %s300
      %p312 = scmp.eq.s32.totalorder %s55, 3
      %p313 = por %p311, %p312
      %p315 = scmp.ne.s32.totalorder %s300, %s314
      %p316 = scmp.eq.s32.totalorder %s55, 0
      %p317 = por %p315, %p316
      %s319 = sadd.s32 %s318, 1
      %p322 = scmp.eq.s32.totalorder %s49, 3
      %p323 = scmp.ne.s32.totalorder %s318, %s320
      %p324 = scmp.eq.s32.totalorder %s49, 0
      %p325 = por %p323, %p324
      %p326 = scmp.ne.s32.totalorder %s318, %s320
      %p327 = scmp.eq.s32.totalorder %s54, 3
      %p328 = por %p326, %p327
      %p329 = scmp.ne.s32.totalorder %s320, %s321
      %p330 = scmp.eq.s32.totalorder %s54, 0
      %p331 = por %p329, %p330
      %p332 = scmp.ne.s32.totalorder %s320, %s321
      %p333 = scmp.eq.s32.totalorder %s55, 3
      %p334 = por %p332, %p333
      %p336 = scmp.ne.s32.totalorder %s321, %s335
      %p337 = scmp.eq.s32.totalorder %s55, 0
      %p338 = por %p336, %p337
      %s340 = sadd.s32 %s339, 1
      %p343 = scmp.eq.s32.totalorder %s49, 3
      %p344 = scmp.ne.s32.totalorder %s339, %s341
      %p345 = scmp.eq.s32.totalorder %s49, 0
      %p346 = por %p344, %p345
      %p347 = scmp.ne.s32.totalorder %s339, %s341
      %p348 = scmp.eq.s32.totalorder %s54, 3
      %p349 = por %p347, %p348
      %p350 = scmp.ne.s32.totalorder %s341, %s342
      %p351 = scmp.eq.s32.totalorder %s54, 0
      %p352 = por %p350, %p351
      %p353 = scmp.ne.s32.totalorder %s341, %s342
      %p354 = scmp.eq.s32.totalorder %s55, 3
      %p355 = por %p353, %p354
      %p357 = scmp.ne.s32.totalorder %s342, %s356
      %p358 = scmp.eq.s32.totalorder %s55, 0
      %p359 = por %p357, %p358
      %s360 = smul.u32 %s56, 2
      %s361 = sadd.s32 %s360, %s57
      %s362 = smul.u32 %s68, 2
      %s363 = sadd.s32 %s362, %s64
      %s364 = ssub.s32 %s361, %s363
      %p365 = scmp.eq.s32.totalorder %s364, 0
      %s367 = sadd.s32 %s366, 1
      %s368 = scalar_select %p365, %s366, %s367
      %p371 = pneg %p365
      %p372 = scmp.eq.s32.totalorder %s49, 3
      %p373 = por %p371, %p372
      %p374 = scmp.ne.s32.totalorder %s366, %s369
      %p375 = scmp.eq.s32.totalorder %s49, 0
      %p376 = por %p374, %p375
      %p377 = scmp.ne.s32.totalorder %s366, %s369
      %p378 = scmp.eq.s32.totalorder %s54, 3
      %p379 = por %p377, %p378
      %p380 = scmp.ne.s32.totalorder %s369, %s370
      %p381 = scmp.eq.s32.totalorder %s54, 0
      %p382 = por %p380, %p381
      %p383 = scmp.ne.s32.totalorder %s369, %s370
      %p384 = scmp.eq.s32.totalorder %s55, 3
      %p385 = por %p383, %p384
      %p387 = scmp.ne.s32.totalorder %s370, %s386
      %p388 = scmp.eq.s32.totalorder %s55, 0
      %p389 = por %p387, %p388
      %s390 = ssub.s32 %s56, %s68
      %p391 = scmp.eq.s32.totalorder %s390, 0
      %s393 = sadd.s32 %s392, 1
      %s394 = scalar_select %p391, %s392, %s393
      %p397 = pneg %p391
      %p398 = scmp.eq.s32.totalorder %s49, 3
      %p399 = por %p397, %p398
      %p400 = scmp.ne.s32.totalorder %s392, %s395
      %p401 = scmp.eq.s32.totalorder %s49, 0
      %p402 = por %p400, %p401
      %p403 = scmp.ne.s32.totalorder %s392, %s395
      %p404 = scmp.eq.s32.totalorder %s54, 3
      %p405 = por %p403, %p404
      %p406 = scmp.ne.s32.totalorder %s395, %s396
      %p407 = scmp.eq.s32.totalorder %s54, 0
      %p408 = por %p406, %p407
      %p409 = scmp.ne.s32.totalorder %s395, %s396
      %p410 = scmp.eq.s32.totalorder %s55, 3
      %p411 = por %p409, %p410
      %p413 = scmp.ne.s32.totalorder %s396, %s412
      %p414 = scmp.eq.s32.totalorder %s55, 0
      %p415 = por %p413, %p414
      %p416 = scmp.le.s32.totalorder 1, %s49
      %p417 = scmp.lt.s32.totalorder %s49, 5
      %p418 = pnand %p416, %p417
      %p419 = pneg %p418
      // Predicated region
      $region9: #{tpu_custom_call.1} parent=5 // pred_check
        _
      $region10: #{tpu_custom_call.1} parent=5 // pred_check_branch
        %421 = sbr.rel (%p418) target = $region12
      $region11: #{tpu_custom_call.1} parent=5 // pred_region
        %s422 = ssub.s32 %s49, 1
        // Predicated region
        $region13: #{tpu_custom_call.1} parent=11 // pred_check
          %p423 = pneg %p142
        $region14: #{tpu_custom_call.1} parent=11 // pred_check_branch
          %425 = sbr.rel (%p423) target = $region16
        $region15: #{tpu_custom_call.1} parent=11 // pred_region
          _
        $region16: #{tpu_custom_call.1} parent=11 // pred_fallthru
          _
        // Predicated region
        $region17: #{tpu_custom_call.1} parent=11 // pred_check
          %p426 = pneg %p163
        $region18: #{tpu_custom_call.1} parent=11 // pred_check_branch
          %428 = sbr.rel (%p426) target = $region20
        $region19: #{tpu_custom_call.1} parent=11 // pred_region
          %s430 = ssub.s32 1024, 1024
          %431 = vsyncadd [#allocation10], %s430
          %s432 = sshll.u32 [#allocation11], 4
          %s433 = int_to_ptr.vmem [resolvable:$true] %s432
          %438 = dma.hbm_to_vmem [thread:$0]  %s6, 1024, %s433, [#allocation10], 64, 64, 4
        $region20: #{tpu_custom_call.1} parent=11 // pred_fallthru
          _
        // Predicated region
        $region21: #{tpu_custom_call.1} parent=11 // pred_check
          %p439 = pneg %p184
        $region22: #{tpu_custom_call.1} parent=11 // pred_check_branch
          %441 = sbr.rel (%p439) target = $region24
        $region23: #{tpu_custom_call.1} parent=11 // pred_region
          %s443 = ssub.s32 1024, 1024
          %444 = vsyncadd [#allocation13], %s443
          %s445 = sshll.u32 [#allocation12], 4
          %s446 = int_to_ptr.vmem [resolvable:$true] %s445
          %451 = dma.hbm_to_vmem [thread:$0]  %s7, 1024, %s446, [#allocation13], 64, 64, 4
        $region24: #{tpu_custom_call.1} parent=11 // pred_fallthru
          _
        // Predicated region
        $region25: #{tpu_custom_call.1} parent=11 // pred_check
          %p452 = pneg %p205
        $region26: #{tpu_custom_call.1} parent=11 // pred_check_branch
          %454 = sbr.rel (%p452) target = $region28
        $region27: #{tpu_custom_call.1} parent=11 // pred_region
          _
        $region28: #{tpu_custom_call.1} parent=11 // pred_fallthru
          _
        // Predicated region
        $region29: #{tpu_custom_call.1} parent=11 // pred_check
          %p455 = pneg %p226
        $region30: #{tpu_custom_call.1} parent=11 // pred_check_branch
          %457 = sbr.rel (%p455) target = $region32
        $region31: #{tpu_custom_call.1} parent=11 // pred_region
          %s459 = ssub.s32 1024, 1024
          %460 = vsyncadd [#allocation13], %s459
          %s461 = sshll.u32 [#allocation14], 4
          %s462 = int_to_ptr.vmem [resolvable:$true] %s461
          %467 = dma.hbm_to_vmem [thread:$0]  %s9, 1024, %s462, [#allocation13], 64, 64, 4
        $region32: #{tpu_custom_call.1} parent=11 // pred_fallthru
          _
        // Predicated region
        $region33: #{tpu_custom_call.1} parent=11 // pred_check
          %p468 = pneg %p247
        $region34: #{tpu_custom_call.1} parent=11 // pred_check_branch
          %470 = sbr.rel (%p468) target = $region36
        $region35: #{tpu_custom_call.1} parent=11 // pred_region
          %s472 = ssub.s32 1024, 1024
          %473 = vsyncadd [#allocation16], %s472
          %s474 = sshll.u32 [#allocation15], 4
          %s475 = int_to_ptr.vmem [resolvable:$true] %s474
          %480 = dma.hbm_to_vmem [thread:$0]  %s10, 1024, %s475, [#allocation16], 64, 64, 4
        $region36: #{tpu_custom_call.1} parent=11 // pred_fallthru
          _
        // Predicated region
        $region37: #{tpu_custom_call.1} parent=11 // pred_check
          %p481 = pneg %p268
        $region38: #{tpu_custom_call.1} parent=11 // pred_check_branch
          %483 = sbr.rel (%p481) target = $region40
        $region39: #{tpu_custom_call.1} parent=11 // pred_region
          _
        $region40: #{tpu_custom_call.1} parent=11 // pred_fallthru
          _
        // Predicated region
        $region41: #{tpu_custom_call.1} parent=11 // pred_check
          %p484 = pneg %p289
        $region42: #{tpu_custom_call.1} parent=11 // pred_check_branch
          %486 = sbr.rel (%p484) target = $region44
        $region43: #{tpu_custom_call.1} parent=11 // pred_region
          %s488 = ssub.s32 1024, 1024
          %489 = vsyncadd [#allocation16], %s488
          %s490 = sshll.u32 [#allocation17], 4
          %s491 = int_to_ptr.vmem [resolvable:$true] %s490
          %496 = dma.hbm_to_vmem [thread:$0]  %s12, 1024, %s491, [#allocation16], 64, 64, 4
        $region44: #{tpu_custom_call.1} parent=11 // pred_fallthru
          _
        // Predicated region
        $region45: #{tpu_custom_call.1} parent=11 // pred_check
          %p497 = pneg %p310
        $region46: #{tpu_custom_call.1} parent=11 // pred_check_branch
          %499 = sbr.rel (%p497) target = $region48
        $region47: #{tpu_custom_call.1} parent=11 // pred_region
          _
        $region48: #{tpu_custom_call.1} parent=11 // pred_fallthru
          _
        // Predicated region
        $region49: #{tpu_custom_call.1} parent=11 // pred_check
          %p500 = pneg %p331
        $region50: #{tpu_custom_call.1} parent=11 // pred_check_branch
          %502 = sbr.rel (%p500) target = $region52
        $region51: #{tpu_custom_call.1} parent=11 // pred_region
          %s504 = ssub.s32 1024, 1024
          %505 = vsyncadd [#allocation19], %s504
          %s506 = sshll.u32 [#allocation18], 4
          %s507 = int_to_ptr.vmem [resolvable:$true] %s506
          %512 = dma.hbm_to_vmem [thread:$0]  %s14, 1024, %s507, [#allocation19], 64, 64, 4
        $region52: #{tpu_custom_call.1} parent=11 // pred_fallthru
          _
        // Predicated region
        $region53: #{tpu_custom_call.1} parent=11 // pred_check
          %p513 = pneg %p352
        $region54: #{tpu_custom_call.1} parent=11 // pred_check_branch
          %515 = sbr.rel (%p513) target = $region56
        $region55: #{tpu_custom_call.1} parent=11 // pred_region
          _
        $region56: #{tpu_custom_call.1} parent=11 // pred_fallthru
          _
      $region12: #{tpu_custom_call.1} parent=5 // pred_fallthru
        _
      %p516 = scmp.lt.s32.totalorder %s49, 4
      // Predicated region
      $region57: #{tpu_custom_call.1} parent=5 // pred_check
        %p517 = pneg %p516
      $region58: #{tpu_custom_call.1} parent=5 // pred_check_branch
        %519 = sbr.rel (%p517) target = $region60
      $region59: #{tpu_custom_call.1} parent=5 // pred_region
        // Predicated region
        $region61: #{tpu_custom_call.1} parent=59 // pred_check
          %p520 = pneg %p85
        $region62: #{tpu_custom_call.1} parent=59 // pred_check_branch
          %522 = sbr.rel (%p520) target = $region64
        $region63: #{tpu_custom_call.1} parent=59 // pred_region
          %s523 = sand.u32 %s75, 1
          %s524 = scalar_lea.sflag [#allocation7], %s523
          %s525 = sand.u32 %s75, 1
          %s526 = smul.addr %s525, 8
          %s527 = scalar_lea.vmem [#allocation6], %s526
          %s528 = smul.u32 %s56, 2
          %s529 = sadd.s32 %s528, %s57
          %s531 = ssub.s32 128, 128
          %532 = vsyncadd %s524, %s531
          %s533 = smul.addr %s529, 128
          %s534 = scalar_lea.hbm %s3, %s533
          %s536 = sshll.u32 %s527, 4
          %s537 = int_to_ptr.vmem [resolvable:$true] %s536
          %539 = dma.hbm_to_vmem [thread:$0]  %s534, 128, %s537, %s524
        $region64: #{tpu_custom_call.1} parent=59 // pred_fallthru
          _
        // Predicated region
        $region65: #{tpu_custom_call.1} parent=59 // pred_check
          %p540 = pneg %p115
        $region66: #{tpu_custom_call.1} parent=59 // pred_check_branch
          %542 = sbr.rel (%p540) target = $region68
        $region67: #{tpu_custom_call.1} parent=59 // pred_region
          %s543 = sand.u32 %s49, 1
          %s544 = scalar_lea.sflag [#allocation10], %s543
          %s545 = sand.u32 %s105, 1
          %s546 = smul.addr %s545, 8
          %s547 = scalar_lea.vmem [#allocation9], %s546
          %s548 = smul.u32 %s56, 2
          %s549 = sadd.s32 %s548, %s57
          %s551 = ssub.s32 128, 128
          %552 = vsyncadd %s544, %s551
          %s553 = smul.addr %s549, 128
          %s554 = scalar_lea.hbm %s4, %s553
          %s556 = sshll.u32 %s547, 4
          %s557 = int_to_ptr.vmem [resolvable:$true] %s556
          %559 = dma.hbm_to_vmem [thread:$0]  %s554, 128, %s557, %s544
        $region68: #{tpu_custom_call.1} parent=59 // pred_fallthru
          _
      $region60: #{tpu_custom_call.1} parent=5 // pred_fallthru
        _
      %p560 = scmp.le.s32.totalorder 1, %s49
      %p561 = scmp.lt.s32.totalorder %s49, 5
      %p562 = pnand %p560, %p561
      %p563 = pneg %p562
      // Predicated region
      $region69: #{tpu_custom_call.1} parent=5 // pred_check
        _
      $region70: #{tpu_custom_call.1} parent=5 // pred_check_branch
        %565 = sbr.rel (%p562) target = $region72
      $region71: #{tpu_custom_call.1} parent=5 // pred_region
        %s566 = ssub.s32 %s49, 1
        %s567 = sand.u32 %s78, 1
        %s568 = scalar_lea.sflag [#allocation7], %s567
        %s569 = sand.u32 %s78, 1
        %s570 = smul.addr %s569, 8
        %s571 = scalar_lea.vmem [#allocation6], %s570
        // Predicated region
        $region73: #{tpu_custom_call.1} parent=71 // pred_check
          %p572 = pneg %p91
        $region74: #{tpu_custom_call.1} parent=71 // pred_check_branch
          %574 = sbr.rel (%p572) target = $region76
        $region75: #{tpu_custom_call.1} parent=71 // pred_region
          %575 = dma.done %s568, 128
        $region76: #{tpu_custom_call.1} parent=71 // pred_fallthru
          _
        %s576 = sand.u32 %s54, 1
        %s577 = scalar_lea.sflag [#allocation10], %s576
        %s578 = sand.u32 %s108, 1
        %s579 = smul.addr %s578, 8
        %s580 = scalar_lea.vmem [#allocation9], %s579
        // Predicated region
        $region77: #{tpu_custom_call.1} parent=71 // pred_check
          %p581 = pneg %p121
        $region78: #{tpu_custom_call.1} parent=71 // pred_check_branch
          %583 = sbr.rel (%p581) target = $region80
        $region79: #{tpu_custom_call.1} parent=71 // pred_region
          %584 = dma.done %s577, 128
        $region80: #{tpu_custom_call.1} parent=71 // pred_fallthru
          _
        // Predicated region
        $region81: #{tpu_custom_call.1} parent=71 // pred_check
          %p585 = pneg %p163
        $region82: #{tpu_custom_call.1} parent=71 // pred_check_branch
          %587 = sbr.rel (%p585) target = $region84
        $region83: #{tpu_custom_call.1} parent=71 // pred_region
          %588 = dma.done [#allocation10], 1024
        $region84: #{tpu_custom_call.1} parent=71 // pred_fallthru
          _
        // Predicated region
        $region85: #{tpu_custom_call.1} parent=71 // pred_check
          %p589 = pneg %p184
        $region86: #{tpu_custom_call.1} parent=71 // pred_check_branch
          %591 = sbr.rel (%p589) target = $region88
        $region87: #{tpu_custom_call.1} parent=71 // pred_region
          %592 = dma.done [#allocation13], 1024
        $region88: #{tpu_custom_call.1} parent=71 // pred_fallthru
          _
        // Predicated region
        $region89: #{tpu_custom_call.1} parent=71 // pred_check
          %p593 = pneg %p226
        $region90: #{tpu_custom_call.1} parent=71 // pred_check_branch
          %595 = sbr.rel (%p593) target = $region92
        $region91: #{tpu_custom_call.1} parent=71 // pred_region
          %596 = dma.done [#allocation13], 1024
        $region92: #{tpu_custom_call.1} parent=71 // pred_fallthru
          _
        // Predicated region
        $region93: #{tpu_custom_call.1} parent=71 // pred_check
          %p597 = pneg %p247
        $region94: #{tpu_custom_call.1} parent=71 // pred_check_branch
          %599 = sbr.rel (%p597) target = $region96
        $region95: #{tpu_custom_call.1} parent=71 // pred_region
          %600 = dma.done [#allocation16], 1024
        $region96: #{tpu_custom_call.1} parent=71 // pred_fallthru
          _
        // Predicated region
        $region97: #{tpu_custom_call.1} parent=71 // pred_check
          %p601 = pneg %p289
        $region98: #{tpu_custom_call.1} parent=71 // pred_check_branch
          %603 = sbr.rel (%p601) target = $region100
        $region99: #{tpu_custom_call.1} parent=71 // pred_region
          %604 = dma.done [#allocation16], 1024
        $region100: #{tpu_custom_call.1} parent=71 // pred_fallthru
          _
        // Predicated region
        $region101: #{tpu_custom_call.1} parent=71 // pred_check
          %p605 = pneg %p331
        $region102: #{tpu_custom_call.1} parent=71 // pred_check_branch
          %607 = sbr.rel (%p605) target = $region104
        $region103: #{tpu_custom_call.1} parent=71 // pred_region
          %608 = dma.done [#allocation19], 1024
        $region104: #{tpu_custom_call.1} parent=71 // pred_fallthru
          _
        %s609 = sand.u32 %s78, 1
        %s610 = scalar_lea.sflag [#allocation7], %s609
        %s611 = sand.u32 %s78, 1
        %s612 = smul.addr %s611, 8
        %s613 = scalar_lea.vmem [#allocation6], %s612
        %p614 = pneg %p91
        %p615 = pneg %p88
        %s616 = sand.u32 %s54, 1
        %s617 = scalar_lea.sflag [#allocation10], %s616
        %s618 = sand.u32 %s108, 1
        %s619 = smul.addr %s618, 8
        %s620 = scalar_lea.vmem [#allocation9], %s619
        %p621 = pneg %p121
        %p622 = pneg %p118
        %p623 = pneg %p142
        %p624 = pneg %p139
        %p625 = pneg %p163
        %p626 = pneg %p160
        %p627 = pneg %p184
        %p628 = pneg %p181
        %p629 = pneg %p205
        %p630 = pneg %p202
        %p631 = pneg %p226
        %p632 = pneg %p223
        %p633 = pneg %p247
        %p634 = pneg %p244
        %p635 = pneg %p268
        %p636 = pneg %p265
        %p637 = pneg %p289
        %p638 = pneg %p286
        %p639 = pneg %p310
        %p640 = pneg %p307
        %p641 = pneg %p331
        %p642 = pneg %p328
        %p643 = pneg %p352
        %p644 = pneg %p349
        %p645 = pneg %p382
        %p646 = pneg %p379
        %s647 = sand.u32 %s369, 1
        %s648 = scalar_lea.sflag [#allocation8], %s647
        %s649 = sand.u32 %s369, 1
        %s650 = smul.addr %s649, 8
        %s651 = scalar_lea.vmem [#allocation20], %s650
        %p652 = pneg %p408
        %p653 = pneg %p405
        %s654 = sand.u32 %s395, 1
        %s655 = scalar_lea.sflag [#allocation22], %s654
        %s656 = sand.u32 %s395, 1
        %s657 = smul.addr %s656, 8
        %s658 = scalar_lea.vmem [#allocation21], %s657
        %s659 = smul.u32 %s58, 2
        %s660 = sadd.s32 %s659, %s59
        %s661 = smul.u32 %s58, 2
        %s662 = sadd.s32 %s661, %s59
        %s663 = smul.u32 %s58, 2
        %s664 = sadd.s32 %s663, %s59
        %s666 = smul.u32 %s58, 2
        %s667 = sadd.s32 %s666, %s59
        %s668 = smul.u32 %s667, 8
        %v669 = vld [vmem:[%s571] sm:$0xff]
        %v670 = vld [vmem:[%s580] sm:$0xff]
        %v671 = vpack.c.bf16 %v669, %v669
        %v672 = vpack.c.bf16 %v670, %v670
        %v673 = vld [vmem:[#allocation11] sm:$0xf]
        %v674 = vld [vmem:[#allocation11 + $0x4] sm:$0xf]
        %v675 = vld [vmem:[#allocation11 + $0x8] sm:$0xf]
        %v676 = vld [vmem:[#allocation11 + $0xc] sm:$0xf]
        %v677 = vld [vmem:[#allocation11 + $0x10] sm:$0xf]
        %v678 = vld [vmem:[#allocation11 + $0x14] sm:$0xf]
        %v679 = vld [vmem:[#allocation11 + $0x18] sm:$0xf]
        %v680 = vld [vmem:[#allocation11 + $0x1c] sm:$0xf]
        %v681 = vld [vmem:[#allocation11 + $0x20] sm:$0xf]
        %v682 = vld [vmem:[#allocation11 + $0x24] sm:$0xf]
        %v683 = vld [vmem:[#allocation11 + $0x28] sm:$0xf]
        %v684 = vld [vmem:[#allocation11 + $0x2c] sm:$0xf]
        %v685 = vld [vmem:[#allocation11 + $0x30] sm:$0xf]
        %v686 = vld [vmem:[#allocation11 + $0x34] sm:$0xf]
        %v687 = vld [vmem:[#allocation11 + $0x38] sm:$0xf]
        %v688 = vld [vmem:[#allocation11 + $0x3c] sm:$0xf]
        %v689 = vld [vmem:[#allocation12] sm:$0xf]
        %v690 = vld [vmem:[#allocation12 + $0x4] sm:$0xf]
        %v691 = vld [vmem:[#allocation12 + $0x8] sm:$0xf]
        %v692 = vld [vmem:[#allocation12 + $0xc] sm:$0xf]
        %v693 = vld [vmem:[#allocation12 + $0x10] sm:$0xf]
        %v694 = vld [vmem:[#allocation12 + $0x14] sm:$0xf]
        %v695 = vld [vmem:[#allocation12 + $0x18] sm:$0xf]
        %v696 = vld [vmem:[#allocation12 + $0x1c] sm:$0xf]
        %v697 = vld [vmem:[#allocation12 + $0x20] sm:$0xf]
        %v698 = vld [vmem:[#allocation12 + $0x24] sm:$0xf]
        %v699 = vld [vmem:[#allocation12 + $0x28] sm:$0xf]
        %v700 = vld [vmem:[#allocation12 + $0x2c] sm:$0xf]
        %v701 = vld [vmem:[#allocation12 + $0x30] sm:$0xf]
        %v702 = vld [vmem:[#allocation12 + $0x34] sm:$0xf]
        %v703 = vld [vmem:[#allocation12 + $0x38] sm:$0xf]
        %v704 = vld [vmem:[#allocation12 + $0x3c] sm:$0xf]
        %v721 = vunpack.c.l.b16 %v689
        %v722 = vunpack.c.l.b16 %v690
        %v723 = vunpack.c.l.b16 %v691
        %v724 = vunpack.c.l.b16 %v692
        %v725 = vunpack.c.l.b16 %v693
        %v726 = vunpack.c.l.b16 %v694
        %v727 = vunpack.c.l.b16 %v695
        %v728 = vunpack.c.l.b16 %v696
        %v729 = vunpack.c.l.b16 %v697
        %v730 = vunpack.c.l.b16 %v698
        %v731 = vunpack.c.l.b16 %v699
        %v732 = vunpack.c.l.b16 %v700
        %v733 = vunpack.c.l.b16 %v701
        %v734 = vunpack.c.l.b16 %v702
        %v735 = vunpack.c.l.b16 %v703
        %v736 = vunpack.c.l.b16 %v704
        %v737 = vpack.c.b16 %v722, %v721
        %v738 = vpack.c.b16 %v724, %v723
        %v739 = vpack.c.b16 %v726, %v725
        %v740 = vpack.c.b16 %v728, %v727
        %v741 = vpack.c.b16 %v730, %v729
        %v742 = vpack.c.b16 %v732, %v731
        %v743 = vpack.c.b16 %v734, %v733
        %v744 = vpack.c.b16 %v736, %v735
        %753 = vmatprep.subr.bf16.mxu0 0
        %754 = vmatpush1.bf16.msra.mxu0 %v744
        %755 = vmatprep.subr.bf16.mxu0 0
        %756 = vmatpush1.bf16.msra.mxu0 %v743
        %757 = vmatprep.subr.bf16.mxu0 0
        %758 = vmatpush1.bf16.msra.mxu0 %v742
        %759 = vmatprep.subr.bf16.mxu0 0
        %760 = vmatpush1.bf16.msra.mxu0 %v741
        %761 = vmatprep.subr.bf16.mxu0 0
        %762 = vmatpush1.bf16.msra.mxu0 %v740
        %763 = vmatprep.subr.bf16.mxu0 0
        %764 = vmatpush1.bf16.msra.mxu0 %v739
        %765 = vmatprep.subr.bf16.mxu0 0
        %766 = vmatpush1.bf16.msra.mxu0 %v738
        %767 = vmatprep.subr.bf16.mxu0 0
        %768 = vmatpush1.bf16.msra.mxu0 %v737
        %769 = vmatprep.subr.bf16.mxu0 0
        %770 = vmatpush2.bf16.msra.mxu0 0
        %771 = vmatprep.subr.bf16.mxu0 0
        %772 = vmatpush2.bf16.msra.mxu0 0
        %773 = vmatprep.subr.bf16.mxu0 0
        %774 = vmatpush2.bf16.msra.mxu0 0
        %775 = vmatprep.subr.bf16.mxu0 0
        %776 = vmatpush2.bf16.msra.mxu0 0
        %777 = vmatprep.subr.bf16.mxu0 0
        %778 = vmatpush2.bf16.msra.mxu0 0
        %779 = vmatprep.subr.bf16.mxu0 0
        %780 = vmatpush2.bf16.msra.mxu0 0
        %781 = vmatprep.subr.bf16.mxu0 0
        %782 = vmatpush2.bf16.msra.mxu0 0
        %783 = vmatprep.subr.bf16.mxu0 0
        %784 = vmatpush2.bf16.msra.mxu0 0
        %785 = vmatprep.mubr.bf16.mxu0 0
        %786 = vmatmul.mubr.bf16.gmra.mxu0 %v672
        %v787 = vpop.f32.mrf.mxu0
        %v788 = vadd.f32 0.0, %v787
        %v789 = vpop.f32.mrf.mxu0
        %v790 = vpop.f32.mrf.mxu0
        %v791 = vpop.f32.mrf.mxu0
        %792 = vdwg.mxu0
        %v809 = vunpack.c.l.b16 %v673
        %v810 = vunpack.c.l.b16 %v674
        %v811 = vunpack.c.l.b16 %v675
        %v812 = vunpack.c.l.b16 %v676
        %v813 = vunpack.c.l.b16 %v677
        %v814 = vunpack.c.l.b16 %v678
        %v815 = vunpack.c.l.b16 %v679
        %v816 = vunpack.c.l.b16 %v680
        %v817 = vunpack.c.l.b16 %v681
        %v818 = vunpack.c.l.b16 %v682
        %v819 = vunpack.c.l.b16 %v683
        %v820 = vunpack.c.l.b16 %v684
        %v821 = vunpack.c.l.b16 %v685
        %v822 = vunpack.c.l.b16 %v686
        %v823 = vunpack.c.l.b16 %v687
        %v824 = vunpack.c.l.b16 %v688
        %v825 = vpack.c.b16 %v810, %v809
        %v826 = vpack.c.b16 %v812, %v811
        %v827 = vpack.c.b16 %v814, %v813
        %v828 = vpack.c.b16 %v816, %v815
        %v829 = vpack.c.b16 %v818, %v817
        %v830 = vpack.c.b16 %v820, %v819
        %v831 = vpack.c.b16 %v822, %v821
        %v832 = vpack.c.b16 %v824, %v823
        %841 = vmatprep.subr.bf16.mxu0 0
        %842 = vmatpush1.bf16.msra.mxu0 %v832
        %843 = vmatprep.subr.bf16.mxu0 0
        %844 = vmatpush1.bf16.msra.mxu0 %v831
        %845 = vmatprep.subr.bf16.mxu0 0
        %846 = vmatpush1.bf16.msra.mxu0 %v830
        %847 = vmatprep.subr.bf16.mxu0 0
        %848 = vmatpush1.bf16.msra.mxu0 %v829
        %849 = vmatprep.subr.bf16.mxu0 0
        %850 = vmatpush1.bf16.msra.mxu0 %v828
        %851 = vmatprep.subr.bf16.mxu0 0
        %852 = vmatpush1.bf16.msra.mxu0 %v827
        %853 = vmatprep.subr.bf16.mxu0 0
        %854 = vmatpush1.bf16.msra.mxu0 %v826
        %855 = vmatprep.subr.bf16.mxu0 0
        %856 = vmatpush1.bf16.msra.mxu0 %v825
        %857 = vmatprep.subr.bf16.mxu0 0
        %858 = vmatpush2.bf16.msra.mxu0 0
        %859 = vmatprep.subr.bf16.mxu0 0
        %860 = vmatpush2.bf16.msra.mxu0 0
        %861 = vmatprep.subr.bf16.mxu0 0
        %862 = vmatpush2.bf16.msra.mxu0 0
        %863 = vmatprep.subr.bf16.mxu0 0
        %864 = vmatpush2.bf16.msra.mxu0 0
        %865 = vmatprep.subr.bf16.mxu0 0
        %866 = vmatpush2.bf16.msra.mxu0 0
        %867 = vmatprep.subr.bf16.mxu0 0
        %868 = vmatpush2.bf16.msra.mxu0 0
        %869 = vmatprep.subr.bf16.mxu0 0
        %870 = vmatpush2.bf16.msra.mxu0 0
        %871 = vmatprep.subr.bf16.mxu0 0
        %872 = vmatpush2.bf16.msra.mxu0 0
        %873 = vmatprep.mubr.bf16.mxu0 0
        %874 = vmatmul.mubr.bf16.gmra.mxu0 %v671
        %v875 = vpop.f32.mrf.mxu0
        %v876 = vadd.f32 %v788, %v875
        %v877 = vpop.f32.mrf.mxu0
        %v878 = vpop.f32.mrf.mxu0
        %v879 = vpop.f32.mrf.mxu0
        %880 = vdwg.mxu0
        %v881 = vld [vmem:[%s8] sm:$0x1]
        %v883 = vlaneseq
        %v884 = vshrl.u32 %v883, 7
        %v885 = vsub.s32 0, %v884
        %v886 = vrot.slane %v881, %v885
        %v888 = vadd.f32 %v876, %v886
        %v889 = vld [vmem:[%s5] sm:$0xff]
        %890 = vrot.lane.b32.xlu0 %v888, 1
        %v891 = vpop.permute.xlu0 %890
        %892 = vrot.lane.b32.xlu0 %v888, 127
        %v893 = vpop.permute.xlu0 %892
        %v894 = vlaneseq
        %v895 = vshrl.u32 %v894, 7
        %v896 = vsub.s32 0, %v895
        %v897 = vrot.slane %v889, %v896
        %v898 = vmul.f32 %v891, %v897
        %v899 = vlaneseq
        %v900 = vshrl.u32 %v899, 7
        %v901 = vsub.s32 1, %v900
        %v902 = vrot.slane %v889, %v901
        %v903 = vmul.f32 %v888, %v902
        %v904 = vadd.f32 %v898, %v903
        %v905 = vlaneseq
        %v906 = vshrl.u32 %v905, 7
        %v907 = vsub.s32 2, %v906
        %v908 = vrot.slane %v889, %v907
        %v909 = vmul.f32 %v893, %v908
        %v910 = vadd.f32 %v904, %v909
        %v911 = vlaneseq
        %v912 = vshrl.u32 %v911, 7
        %v913 = vsub.s32 3, %v912
        %v914 = vrot.slane %v889, %v913
        %v915 = vmul.f32 %v891, %v914
        %v916 = vsub.f32 %v910, %v915
        %v917 = vxor.u32 %v916, 2147483648
        %v918 = vmul.f32 %v917, 1.442695
        %v919 = vpow.pop %v918
        %v920 = vadd.f32 %v919, 1.0
        %v921 = vrcp.pop %v920
        %v922 = vmul.f32 1.0, %v921
        %v923 = vlaneseq
        %v924 = vshrl.u32 %v923, 7
        %v925 = vsub.s32 4, %v924
        %v926 = vrot.slane %v889, %v925
        %v927 = vmul.f32 %v893, %v926
        %v928 = vsub.f32 %v910, %v927
        %v929 = vxor.u32 %v928, 2147483648
        %v930 = vmul.f32 %v929, 1.442695
        %v931 = vpow.pop %v930
        %v932 = vadd.f32 %v931, 1.0
        %v933 = vrcp.pop %v932
        %v934 = vmul.f32 1.0, %v933
        %v935 = vpack.c.bf16 %v922, %v922
        %v936 = vld [vmem:[#allocation14] sm:$0xf]
        %v937 = vld [vmem:[#allocation14 + $0x4] sm:$0xf]
        %v938 = vld [vmem:[#allocation14 + $0x8] sm:$0xf]
        %v939 = vld [vmem:[#allocation14 + $0xc] sm:$0xf]
        %v940 = vld [vmem:[#allocation14 + $0x10] sm:$0xf]
        %v941 = vld [vmem:[#allocation14 + $0x14] sm:$0xf]
        %v942 = vld [vmem:[#allocation14 + $0x18] sm:$0xf]
        %v943 = vld [vmem:[#allocation14 + $0x1c] sm:$0xf]
        %v944 = vld [vmem:[#allocation14 + $0x20] sm:$0xf]
        %v945 = vld [vmem:[#allocation14 + $0x24] sm:$0xf]
        %v946 = vld [vmem:[#allocation14 + $0x28] sm:$0xf]
        %v947 = vld [vmem:[#allocation14 + $0x2c] sm:$0xf]
        %v948 = vld [vmem:[#allocation14 + $0x30] sm:$0xf]
        %v949 = vld [vmem:[#allocation14 + $0x34] sm:$0xf]
        %v950 = vld [vmem:[#allocation14 + $0x38] sm:$0xf]
        %v951 = vld [vmem:[#allocation14 + $0x3c] sm:$0xf]
        %v952 = vpack.c.bf16 %v934, %v934
        %v953 = vld [vmem:[#allocation15] sm:$0xf]
        %v954 = vld [vmem:[#allocation15 + $0x4] sm:$0xf]
        %v955 = vld [vmem:[#allocation15 + $0x8] sm:$0xf]
        %v956 = vld [vmem:[#allocation15 + $0xc] sm:$0xf]
        %v957 = vld [vmem:[#allocation15 + $0x10] sm:$0xf]
        %v958 = vld [vmem:[#allocation15 + $0x14] sm:$0xf]
        %v959 = vld [vmem:[#allocation15 + $0x18] sm:$0xf]
        %v960 = vld [vmem:[#allocation15 + $0x1c] sm:$0xf]
        %v961 = vld [vmem:[#allocation15 + $0x20] sm:$0xf]
        %v962 = vld [vmem:[#allocation15 + $0x24] sm:$0xf]
        %v963 = vld [vmem:[#allocation15 + $0x28] sm:$0xf]
        %v964 = vld [vmem:[#allocation15 + $0x2c] sm:$0xf]
        %v965 = vld [vmem:[#allocation15 + $0x30] sm:$0xf]
        %v966 = vld [vmem:[#allocation15 + $0x34] sm:$0xf]
        %v967 = vld [vmem:[#allocation15 + $0x38] sm:$0xf]
        %v968 = vld [vmem:[#allocation15 + $0x3c] sm:$0xf]
        %v985 = vunpack.c.l.b16 %v953
        %v986 = vunpack.c.l.b16 %v954
        %v987 = vunpack.c.l.b16 %v955
        %v988 = vunpack.c.l.b16 %v956
        %v989 = vunpack.c.l.b16 %v957
        %v990 = vunpack.c.l.b16 %v958
        %v991 = vunpack.c.l.b16 %v959
        %v992 = vunpack.c.l.b16 %v960
        %v993 = vunpack.c.l.b16 %v961
        %v994 = vunpack.c.l.b16 %v962
        %v995 = vunpack.c.l.b16 %v963
        %v996 = vunpack.c.l.b16 %v964
        %v997 = vunpack.c.l.b16 %v965
        %v998 = vunpack.c.l.b16 %v966
        %v999 = vunpack.c.l.b16 %v967
        %v1000 = vunpack.c.l.b16 %v968
        %v1001 = vpack.c.b16 %v986, %v985
        %v1002 = vpack.c.b16 %v988, %v987
        %v1003 = vpack.c.b16 %v990, %v989
        %v1004 = vpack.c.b16 %v992, %v991
        %v1005 = vpack.c.b16 %v994, %v993
        %v1006 = vpack.c.b16 %v996, %v995
        %v1007 = vpack.c.b16 %v998, %v997
        %v1008 = vpack.c.b16 %v1000, %v999
        %1017 = vmatprep.subr.bf16.mxu0 0
        %1018 = vmatpush1.bf16.msra.mxu0 %v1008
        %1019 = vmatprep.subr.bf16.mxu0 0
        %1020 = vmatpush1.bf16.msra.mxu0 %v1007
        %1021 = vmatprep.subr.bf16.mxu0 0
        %1022 = vmatpush1.bf16.msra.mxu0 %v1006
        %1023 = vmatprep.subr.bf16.mxu0 0
        %1024 = vmatpush1.bf16.msra.mxu0 %v1005
        %1025 = vmatprep.subr.bf16.mxu0 0
        %1026 = vmatpush1.bf16.msra.mxu0 %v1004
        %1027 = vmatprep.subr.bf16.mxu0 0
        %1028 = vmatpush1.bf16.msra.mxu0 %v1003
        %1029 = vmatprep.subr.bf16.mxu0 0
        %1030 = vmatpush1.bf16.msra.mxu0 %v1002
        %1031 = vmatprep.subr.bf16.mxu0 0
        %1032 = vmatpush1.bf16.msra.mxu0 %v1001
        %1033 = vmatprep.subr.bf16.mxu0 0
        %1034 = vmatpush2.bf16.msra.mxu0 0
        %1035 = vmatprep.subr.bf16.mxu0 0
        %1036 = vmatpush2.bf16.msra.mxu0 0
        %1037 = vmatprep.subr.bf16.mxu0 0
        %1038 = vmatpush2.bf16.msra.mxu0 0
        %1039 = vmatprep.subr.bf16.mxu0 0
        %1040 = vmatpush2.bf16.msra.mxu0 0
        %1041 = vmatprep.subr.bf16.mxu0 0
        %1042 = vmatpush2.bf16.msra.mxu0 0
        %1043 = vmatprep.subr.bf16.mxu0 0
        %1044 = vmatpush2.bf16.msra.mxu0 0
        %1045 = vmatprep.subr.bf16.mxu0 0
        %1046 = vmatpush2.bf16.msra.mxu0 0
        %1047 = vmatprep.subr.bf16.mxu0 0
        %1048 = vmatpush2.bf16.msra.mxu0 0
        %1049 = vmatprep.mubr.bf16.mxu0 0
        %1050 = vmatmul.mubr.bf16.gmra.mxu0 %v952
        %v1051 = vpop.f32.mrf.mxu0
        %v1052 = vadd.f32 0.0, %v1051
        %v1053 = vpop.f32.mrf.mxu0
        %v1054 = vpop.f32.mrf.mxu0
        %v1055 = vpop.f32.mrf.mxu0
        %1056 = vdwg.mxu0
        %v1073 = vunpack.c.l.b16 %v936
        %v1074 = vunpack.c.l.b16 %v937
        %v1075 = vunpack.c.l.b16 %v938
        %v1076 = vunpack.c.l.b16 %v939
        %v1077 = vunpack.c.l.b16 %v940
        %v1078 = vunpack.c.l.b16 %v941
        %v1079 = vunpack.c.l.b16 %v942
        %v1080 = vunpack.c.l.b16 %v943
        %v1081 = vunpack.c.l.b16 %v944
        %v1082 = vunpack.c.l.b16 %v945
        %v1083 = vunpack.c.l.b16 %v946
        %v1084 = vunpack.c.l.b16 %v947
        %v1085 = vunpack.c.l.b16 %v948
        %v1086 = vunpack.c.l.b16 %v949
        %v1087 = vunpack.c.l.b16 %v950
        %v1088 = vunpack.c.l.b16 %v951
        %v1089 = vpack.c.b16 %v1074, %v1073
        %v1090 = vpack.c.b16 %v1076, %v1075
        %v1091 = vpack.c.b16 %v1078, %v1077
        %v1092 = vpack.c.b16 %v1080, %v1079
        %v1093 = vpack.c.b16 %v1082, %v1081
        %v1094 = vpack.c.b16 %v1084, %v1083
        %v1095 = vpack.c.b16 %v1086, %v1085
        %v1096 = vpack.c.b16 %v1088, %v1087
        %1105 = vmatprep.subr.bf16.mxu0 0
        %1106 = vmatpush1.bf16.msra.mxu0 %v1096
        %1107 = vmatprep.subr.bf16.mxu0 0
        %1108 = vmatpush1.bf16.msra.mxu0 %v1095
        %1109 = vmatprep.subr.bf16.mxu0 0
        %1110 = vmatpush1.bf16.msra.mxu0 %v1094
        %1111 = vmatprep.subr.bf16.mxu0 0
        %1112 = vmatpush1.bf16.msra.mxu0 %v1093
        %1113 = vmatprep.subr.bf16.mxu0 0
        %1114 = vmatpush1.bf16.msra.mxu0 %v1092
        %1115 = vmatprep.subr.bf16.mxu0 0
        %1116 = vmatpush1.bf16.msra.mxu0 %v1091
        %1117 = vmatprep.subr.bf16.mxu0 0
        %1118 = vmatpush1.bf16.msra.mxu0 %v1090
        %1119 = vmatprep.subr.bf16.mxu0 0
        %1120 = vmatpush1.bf16.msra.mxu0 %v1089
        %1121 = vmatprep.subr.bf16.mxu0 0
        %1122 = vmatpush2.bf16.msra.mxu0 0
        %1123 = vmatprep.subr.bf16.mxu0 0
        %1124 = vmatpush2.bf16.msra.mxu0 0
        %1125 = vmatprep.subr.bf16.mxu0 0
        %1126 = vmatpush2.bf16.msra.mxu0 0
        %1127 = vmatprep.subr.bf16.mxu0 0
        %1128 = vmatpush2.bf16.msra.mxu0 0
        %1129 = vmatprep.subr.bf16.mxu0 0
        %1130 = vmatpush2.bf16.msra.mxu0 0
        %1131 = vmatprep.subr.bf16.mxu0 0
        %1132 = vmatpush2.bf16.msra.mxu0 0
        %1133 = vmatprep.subr.bf16.mxu0 0
        %1134 = vmatpush2.bf16.msra.mxu0 0
        %1135 = vmatprep.subr.bf16.mxu0 0
        %1136 = vmatpush2.bf16.msra.mxu0 0
        %1137 = vmatprep.mubr.bf16.mxu0 0
        %1138 = vmatmul.mubr.bf16.gmra.mxu0 %v935
        %v1139 = vpop.f32.mrf.mxu0
        %v1140 = vadd.f32 %v1052, %v1139
        %v1141 = vpop.f32.mrf.mxu0
        %v1142 = vpop.f32.mrf.mxu0
        %v1143 = vpop.f32.mrf.mxu0
        %1144 = vdwg.mxu0
        %v1145 = vld [vmem:[%s11] sm:$0x1]
        %v1147 = vlaneseq
        %v1148 = vshrl.u32 %v1147, 7
        %v1149 = vsub.s32 0, %v1148
        %v1150 = vrot.slane %v1145, %v1149
        %v1152 = vadd.f32 %v1140, %v1150
        %v1153 = vld [vmem:[#allocation17] sm:$0xf]
        %v1154 = vld [vmem:[#allocation17 + $0x4] sm:$0xf]
        %v1155 = vld [vmem:[#allocation17 + $0x8] sm:$0xf]
        %v1156 = vld [vmem:[#allocation17 + $0xc] sm:$0xf]
        %v1157 = vld [vmem:[#allocation17 + $0x10] sm:$0xf]
        %v1158 = vld [vmem:[#allocation17 + $0x14] sm:$0xf]
        %v1159 = vld [vmem:[#allocation17 + $0x18] sm:$0xf]
        %v1160 = vld [vmem:[#allocation17 + $0x1c] sm:$0xf]
        %v1161 = vld [vmem:[#allocation17 + $0x20] sm:$0xf]
        %v1162 = vld [vmem:[#allocation17 + $0x24] sm:$0xf]
        %v1163 = vld [vmem:[#allocation17 + $0x28] sm:$0xf]
        %v1164 = vld [vmem:[#allocation17 + $0x2c] sm:$0xf]
        %v1165 = vld [vmem:[#allocation17 + $0x30] sm:$0xf]
        %v1166 = vld [vmem:[#allocation17 + $0x34] sm:$0xf]
        %v1167 = vld [vmem:[#allocation17 + $0x38] sm:$0xf]
        %v1168 = vld [vmem:[#allocation17 + $0x3c] sm:$0xf]
        %v1169 = vld [vmem:[%s13] sm:$0x1]
        %v1171 = vlaneseq
        %v1172 = vshrl.u32 %v1171, 7
        %v1173 = vsub.s32 0, %v1172
        %v1174 = vrot.slane %v1169, %v1173
        %v1192 = vunpack.c.l.b16 %v1153
        %v1193 = vunpack.c.l.b16 %v1154
        %v1194 = vunpack.c.l.b16 %v1155
        %v1195 = vunpack.c.l.b16 %v1156
        %v1196 = vunpack.c.l.b16 %v1157
        %v1197 = vunpack.c.l.b16 %v1158
        %v1198 = vunpack.c.l.b16 %v1159
        %v1199 = vunpack.c.l.b16 %v1160
        %v1200 = vunpack.c.l.b16 %v1161
        %v1201 = vunpack.c.l.b16 %v1162
        %v1202 = vunpack.c.l.b16 %v1163
        %v1203 = vunpack.c.l.b16 %v1164
        %v1204 = vunpack.c.l.b16 %v1165
        %v1205 = vunpack.c.l.b16 %v1166
        %v1206 = vunpack.c.l.b16 %v1167
        %v1207 = vunpack.c.l.b16 %v1168
        %v1208 = vpack.c.b16 %v1193, %v1192
        %v1209 = vpack.c.b16 %v1195, %v1194
        %v1210 = vpack.c.b16 %v1197, %v1196
        %v1211 = vpack.c.b16 %v1199, %v1198
        %v1212 = vpack.c.b16 %v1201, %v1200
        %v1213 = vpack.c.b16 %v1203, %v1202
        %v1214 = vpack.c.b16 %v1205, %v1204
        %v1215 = vpack.c.b16 %v1207, %v1206
        %1224 = vmatprep.subr.bf16.mxu0 0
        %1225 = vmatpush1.bf16.msra.mxu0 %v1215
        %1226 = vmatprep.subr.bf16.mxu0 0
        %1227 = vmatpush1.bf16.msra.mxu0 %v1214
        %1228 = vmatprep.subr.bf16.mxu0 0
        %1229 = vmatpush1.bf16.msra.mxu0 %v1213
        %1230 = vmatprep.subr.bf16.mxu0 0
        %1231 = vmatpush1.bf16.msra.mxu0 %v1212
        %1232 = vmatprep.subr.bf16.mxu0 0
        %1233 = vmatpush1.bf16.msra.mxu0 %v1211
        %1234 = vmatprep.subr.bf16.mxu0 0
        %1235 = vmatpush1.bf16.msra.mxu0 %v1210
        %1236 = vmatprep.subr.bf16.mxu0 0
        %1237 = vmatpush1.bf16.msra.mxu0 %v1209
        %1238 = vmatprep.subr.bf16.mxu0 0
        %1239 = vmatpush1.bf16.msra.mxu0 %v1208
        %1240 = vmatprep.subr.bf16.mxu0 0
        %1241 = vmatpush2.bf16.msra.mxu0 0
        %1242 = vmatprep.subr.bf16.mxu0 0
        %1243 = vmatpush2.bf16.msra.mxu0 0
        %1244 = vmatprep.subr.bf16.mxu0 0
        %1245 = vmatpush2.bf16.msra.mxu0 0
        %1246 = vmatprep.subr.bf16.mxu0 0
        %1247 = vmatpush2.bf16.msra.mxu0 0
        %1248 = vmatprep.subr.bf16.mxu0 0
        %1249 = vmatpush2.bf16.msra.mxu0 0
        %1250 = vmatprep.subr.bf16.mxu0 0
        %1251 = vmatpush2.bf16.msra.mxu0 0
        %1252 = vmatprep.subr.bf16.mxu0 0
        %1253 = vmatpush2.bf16.msra.mxu0 0
        %1254 = vmatprep.subr.bf16.mxu0 0
        %1255 = vmatpush2.bf16.msra.mxu0 0
        %1256 = vmatprep.mubr.bf16.mxu0 0
        %1257 = vmatmul.mubr.bf16.gmra.mxu0 %v671
        %v1258 = vpop.f32.mrf.mxu0
        %v1259 = vadd.f32 %v1174, %v1258
        %v1260 = vpop.f32.mrf.mxu0
        %v1261 = vpop.f32.mrf.mxu0
        %v1262 = vpop.f32.mrf.mxu0
        %1263 = vdwg.mxu0
        %v1264 = vmax.f32 %v1259, 0.0
        %v1265 = vld [vmem:[#allocation18] sm:$0xf]
        %v1266 = vld [vmem:[#allocation18 + $0x4] sm:$0xf]
        %v1267 = vld [vmem:[#allocation18 + $0x8] sm:$0xf]
        %v1268 = vld [vmem:[#allocation18 + $0xc] sm:$0xf]
        %v1269 = vld [vmem:[#allocation18 + $0x10] sm:$0xf]
        %v1270 = vld [vmem:[#allocation18 + $0x14] sm:$0xf]
        %v1271 = vld [vmem:[#allocation18 + $0x18] sm:$0xf]
        %v1272 = vld [vmem:[#allocation18 + $0x1c] sm:$0xf]
        %v1273 = vld [vmem:[#allocation18 + $0x20] sm:$0xf]
        %v1274 = vld [vmem:[#allocation18 + $0x24] sm:$0xf]
        %v1275 = vld [vmem:[#allocation18 + $0x28] sm:$0xf]
        %v1276 = vld [vmem:[#allocation18 + $0x2c] sm:$0xf]
        %v1277 = vld [vmem:[#allocation18 + $0x30] sm:$0xf]
        %v1278 = vld [vmem:[#allocation18 + $0x34] sm:$0xf]
        %v1279 = vld [vmem:[#allocation18 + $0x38] sm:$0xf]
        %v1280 = vld [vmem:[#allocation18 + $0x3c] sm:$0xf]
        %v1281 = vld [vmem:[%s15] sm:$0x1]
        %v1283 = vlaneseq
        %v1284 = vshrl.u32 %v1283, 7
        %v1285 = vsub.s32 0, %v1284
        %v1286 = vrot.slane %v1281, %v1285
        %v1304 = vunpack.c.l.b16 %v1265
        %v1305 = vunpack.c.l.b16 %v1266
        %v1306 = vunpack.c.l.b16 %v1267
        %v1307 = vunpack.c.l.b16 %v1268
        %v1308 = vunpack.c.l.b16 %v1269
        %v1309 = vunpack.c.l.b16 %v1270
        %v1310 = vunpack.c.l.b16 %v1271
        %v1311 = vunpack.c.l.b16 %v1272
        %v1312 = vunpack.c.l.b16 %v1273
        %v1313 = vunpack.c.l.b16 %v1274
        %v1314 = vunpack.c.l.b16 %v1275
        %v1315 = vunpack.c.l.b16 %v1276
        %v1316 = vunpack.c.l.b16 %v1277
        %v1317 = vunpack.c.l.b16 %v1278
        %v1318 = vunpack.c.l.b16 %v1279
        %v1319 = vunpack.c.l.b16 %v1280
        %v1320 = vpack.c.b16 %v1305, %v1304
        %v1321 = vpack.c.b16 %v1307, %v1306
        %v1322 = vpack.c.b16 %v1309, %v1308
        %v1323 = vpack.c.b16 %v1311, %v1310
        %v1324 = vpack.c.b16 %v1313, %v1312
        %v1325 = vpack.c.b16 %v1315, %v1314
        %v1326 = vpack.c.b16 %v1317, %v1316
        %v1327 = vpack.c.b16 %v1319, %v1318
        %1336 = vmatprep.subr.bf16.mxu0 0
        %1337 = vmatpush1.bf16.msra.mxu0 %v1327
        %1338 = vmatprep.subr.bf16.mxu0 0
        %1339 = vmatpush1.bf16.msra.mxu0 %v1326
        %1340 = vmatprep.subr.bf16.mxu0 0
        %1341 = vmatpush1.bf16.msra.mxu0 %v1325
        %1342 = vmatprep.subr.bf16.mxu0 0
        %1343 = vmatpush1.bf16.msra.mxu0 %v1324
        %1344 = vmatprep.subr.bf16.mxu0 0
        %1345 = vmatpush1.bf16.msra.mxu0 %v1323
        %1346 = vmatprep.subr.bf16.mxu0 0
        %1347 = vmatpush1.bf16.msra.mxu0 %v1322
        %1348 = vmatprep.subr.bf16.mxu0 0
        %1349 = vmatpush1.bf16.msra.mxu0 %v1321
        %1350 = vmatprep.subr.bf16.mxu0 0
        %1351 = vmatpush1.bf16.msra.mxu0 %v1320
        %1352 = vmatprep.subr.bf16.mxu0 0
        %1353 = vmatpush2.bf16.msra.mxu0 0
        %1354 = vmatprep.subr.bf16.mxu0 0
        %1355 = vmatpush2.bf16.msra.mxu0 0
        %1356 = vmatprep.subr.bf16.mxu0 0
        %1357 = vmatpush2.bf16.msra.mxu0 0
        %1358 = vmatprep.subr.bf16.mxu0 0
        %1359 = vmatpush2.bf16.msra.mxu0 0
        %1360 = vmatprep.subr.bf16.mxu0 0
        %1361 = vmatpush2.bf16.msra.mxu0 0
        %1362 = vmatprep.subr.bf16.mxu0 0
        %1363 = vmatpush2.bf16.msra.mxu0 0
        %1364 = vmatprep.subr.bf16.mxu0 0
        %1365 = vmatpush2.bf16.msra.mxu0 0
        %1366 = vmatprep.subr.bf16.mxu0 0
        %1367 = vmatpush2.bf16.msra.mxu0 0
        %1368 = vmatprep.mubr.bf16.mxu0 0
        %1369 = vmatmul.mubr.bf16.gmra.mxu0 %v672
        %v1370 = vpop.f32.mrf.mxu0
        %v1371 = vadd.f32 %v1286, %v1370
        %v1372 = vpop.f32.mrf.mxu0
        %v1373 = vpop.f32.mrf.mxu0
        %v1374 = vpop.f32.mrf.mxu0
        %1375 = vdwg.mxu0
        %v1376 = vmax.f32 %v1371, 0.0
        %v1377 = vmul.f32 %v1152, %v1264
        %v1378 = vadd.f32 %v1377, %v669
        %v1379 = vsub.f32 1.0, %v1152
        %v1380 = vmul.f32 %v1379, %v1376
        %v1381 = vadd.f32 %v1378, %v1380
        %v1382 = vadd.f32 %v1381, %v670
        %1383 = vst [vmem:[%s651] sm:$0xff] %v1382
        %p1384 = scmp.eq.s32.totalorder %s59, 0
        // Predicated region
        $region105: #{tpu_custom_call.1} parent=71 // pred_check
          %p1385 = pneg %p1384
        $region106: #{tpu_custom_call.1} parent=71 // pred_check_branch
          %1387 = sbr.rel (%p1385) target = $region108
        $region107: #{tpu_custom_call.1} parent=71 // pred_region
          %1388 = vst [vmem:[%s658] sm:$0xff] -1e+30
        $region108: #{tpu_custom_call.1} parent=71 // pred_fallthru
          _
        %s1389 = sld [smem:[#allocation4 + %s667]]
        %s1390 = sld [smem:[#allocation5 + %s667]]
        %v1391 = vlaneseq
        %v1392 = vshrl.u32 %v1391, 7
        %v1393 = vstv %s668
        %v1394 = vadd.s32 %v1392, %v1393
        %s1395 = sadd.s32 %s1390, 1
        // While loop
        $region109: #{tpu_custom_call.1} parent=71 // loop_pre_header
          _
        $region110: #{tpu_custom_call.1} parent=71 // loop_header
          %s1397 = sphi %s1389, %s1399
          %p1398 = scmp.ge.s32.totalorder %s1397, %s1395
        $region111: #{tpu_custom_call.1} parent=71 // loop_header_branch
          %1401 = sbr.rel (%p1398) target = $region115
        $region112: #{tpu_custom_call.1} parent=71 // loop_body
          %s1402 = sld [smem:[#allocation3 + %s1397]]
          %s1403 = sadd.s32 %s1397, 1
          %s1404 = sld [smem:[#allocation3 + %s1403]]
          %v1405 = vstv %s1402
          %vm1406 = vcmp.ge.s32.totalorder %v1394, %v1405
          %v1407 = vstv %s1404
          %vm1408 = vcmp.lt.s32.totalorder %v1394, %v1407
          %vm1409 = vmand %vm1406, %vm1408
          %v1410 = vsel %vm1409, 1, 0
          %vm1411 = vcmp.eq.s32.totalorder %v1410, 1
          %v1412 = vsel %vm1411, %v1382, -1e+30
          %v1413 = vrot.slane %v1412, 4
          %v1414 = vmax.f32 %v1412, %v1413
          %v1415 = vrot.slane %v1414, 2
          %v1416 = vmax.f32 %v1414, %v1415
          %v1417 = vrot.slane %v1416, 1
          %v1418 = vmax.f32 %v1416, %v1417
          %s1419 = scalar_lea.vmem %s658, %s1397 [#allocation21]
          %v1420 = vld [vmem:[%s1419] sm:$0x1]
          %v1421 = vmax.f32 %v1420, %v1418
          %1422 = vst [vmem:[%s1419] sm:$0x1] %v1421
        $region113: #{tpu_custom_call.1} parent=71 // loop_footer
          %s1399 = sadd.s32 %s1397, 1
        $region114: #{tpu_custom_call.1} parent=71 // loop_footer_branch
          %1396 = sbr.rel target = $region110
        $region115: #{tpu_custom_call.1} parent=71 // loop_exit
          _
        %s1423 = sand.u32 %s369, 1
        %s1424 = scalar_lea.sflag [#allocation8], %s1423
        %s1425 = sand.u32 %s369, 1
        %s1426 = smul.addr %s1425, 8
        %s1427 = scalar_lea.vmem [#allocation20], %s1426
        %s1428 = sand.u32 %s395, 1
        %s1429 = scalar_lea.sflag [#allocation22], %s1428
        %s1430 = sand.u32 %s395, 1
        %s1431 = smul.addr %s1430, 8
        %s1432 = scalar_lea.vmem [#allocation21], %s1431
        // Predicated region
        $region116: #{tpu_custom_call.1} parent=71 // pred_check
          %p1433 = pneg %p379
        $region117: #{tpu_custom_call.1} parent=71 // pred_check_branch
          %1435 = sbr.rel (%p1433) target = $region119
        $region118: #{tpu_custom_call.1} parent=71 // pred_region
          %s1436 = smul.u32 %s58, 2
          %s1437 = sadd.s32 %s1436, %s59
          %s1439 = ssub.s32 128, 128
          %1440 = vsyncadd %s1424, %s1439
          %s1441 = smul.addr %s1437, 128
          %s1442 = scalar_lea.hbm %s16, %s1441
          %s1444 = sshll.u32 %s1427, 4
          %s1445 = int_to_ptr.vmem [resolvable:$true] %s1444
          %1447 = dma.vmem_to_hbm [thread:$0]  %s1445, 128, %s1442, %s1424
        $region119: #{tpu_custom_call.1} parent=71 // pred_fallthru
          _
        // Predicated region
        $region120: #{tpu_custom_call.1} parent=71 // pred_check
          %p1448 = pneg %p405
        $region121: #{tpu_custom_call.1} parent=71 // pred_check_branch
          %1450 = sbr.rel (%p1448) target = $region123
        $region122: #{tpu_custom_call.1} parent=71 // pred_region
          %s1452 = ssub.s32 128, 128
          %1453 = vsyncadd %s1429, %s1452
          %s1454 = smul.addr %s58, 128
          %s1455 = scalar_lea.hbm %s17, %s1454
          %s1457 = sshll.u32 %s1432, 4
          %s1458 = int_to_ptr.vmem [resolvable:$true] %s1457
          %1460 = dma.vmem_to_hbm [thread:$0]  %s1458, 128, %s1455, %s1429
        $region123: #{tpu_custom_call.1} parent=71 // pred_fallthru
          _
      $region72: #{tpu_custom_call.1} parent=5 // pred_fallthru
        _
      %p1461 = scmp.le.s32.totalorder 2, %s49
      // Predicated region
      $region124: #{tpu_custom_call.1} parent=5 // pred_check
        %p1462 = pneg %p1461
      $region125: #{tpu_custom_call.1} parent=5 // pred_check_branch
        %1464 = sbr.rel (%p1462) target = $region127
      $region126: #{tpu_custom_call.1} parent=5 // pred_region
        %s1465 = ssub.s32 %s49, 2
        // Predicated region
        $region128: #{tpu_custom_call.1} parent=126 // pred_check
          %p1466 = pneg %p385
        $region129: #{tpu_custom_call.1} parent=126 // pred_check_branch
          %1468 = sbr.rel (%p1466) target = $region131
        $region130: #{tpu_custom_call.1} parent=126 // pred_region
          %s1469 = sand.u32 %s370, 1
          %s1470 = scalar_lea.sflag [#allocation8], %s1469
          %s1471 = sand.u32 %s370, 1
          %s1472 = smul.addr %s1471, 8
          %s1473 = scalar_lea.vmem [#allocation20], %s1472
          %1474 = dma.done %s1470, 128
        $region131: #{tpu_custom_call.1} parent=126 // pred_fallthru
          _
        // Predicated region
        $region132: #{tpu_custom_call.1} parent=126 // pred_check
          %p1475 = pneg %p411
        $region133: #{tpu_custom_call.1} parent=126 // pred_check_branch
          %1477 = sbr.rel (%p1475) target = $region135
        $region134: #{tpu_custom_call.1} parent=126 // pred_region
          %s1478 = sand.u32 %s396, 1
          %s1479 = scalar_lea.sflag [#allocation22], %s1478
          %s1480 = sand.u32 %s396, 1
          %s1481 = smul.addr %s1480, 8
          %s1482 = scalar_lea.vmem [#allocation21], %s1481
          %1483 = dma.done %s1479, 128
        $region135: #{tpu_custom_call.1} parent=126 // pred_fallthru
          _
      $region127: #{tpu_custom_call.1} parent=5 // pred_fallthru
        _
    $region6: #{tpu_custom_call.1} parent=1 // loop_footer
      %s53 = sadd.s32 1, %s49
    $region7: #{tpu_custom_call.1} parent=1 // loop_footer_branch
      %48 = sbr.rel target = $region3
    $region8: #{tpu_custom_call.1} parent=1 // loop_exit
      _
    %1484 = vsyncpa [#allocation7], 1
    %s1485 = scalar_lea.sflag [#allocation7], 1
    %1486 = vsyncpa %s1485, 1
    %1487 = vsyncpa [#allocation10], 1
    %s1488 = scalar_lea.sflag [#allocation10], 1
    %1489 = vsyncpa %s1488, 1
    %1490 = vsyncpa [#allocation13], 1
    %1491 = vsyncpa [#allocation16], 1
    %1492 = vsyncpa [#allocation19], 1
    %1493 = vsyncpa [#allocation8], 1
    %s1494 = scalar_lea.sflag [#allocation8], 1
    %1495 = vsyncpa %s1494, 1
    %1496 = vsyncpa [#allocation22], 1
    %s1497 = scalar_lea.sflag [#allocation22], 1
    %1498 = vsyncpa %s1497, 1

</llo_original>
